<compile_context>
chip_gen: v6e
topology: v6e:2x2x1
jax: 0.10.0
libtpu: 0.0.40
codegen_flags: <defaults>
</compile_context>

<pallas_src>
import math

import jax
import jax.numpy as jnp
from jax.experimental import pallas as pl
from jax.experimental.pallas import tpu as pltpu


# ----------------------------- small helpers -------------------------------

def _round_up(a: int, b: int) -> int:
    return ((a + b - 1) // b) * b


def _cdiv(a: int, b: int) -> int:
    return (a + b - 1) // b


def _vmem_budget_bytes() -> int:
    """~75% of per-core VMEM capacity (falls back to a safe 48 MiB)."""
    try:
        cap = int(pltpu.get_tpu_info().vmem_capacity_bytes)
    except Exception:
        cap = 64 << 20
    if cap <= 0:
        cap = 64 << 20
    return min(int(cap * 3 // 4), 100 << 20)


def _min_grid_steps() -> int:
    """2 steps (pipelining) on single-TC chips, 4 on dual-TC v7x."""
    try:
        kind = jax.devices()[0].device_kind.lower()
    except Exception:
        kind = ""
    return 4 if ("v7" in kind or "7x" in kind) else 2


def _vmem_spec() -> pl.BlockSpec:
    # Whole array resident in VMEM, copied in once (not pipelined / not
    # double-buffered) -- used for all parameters.
    return pl.BlockSpec(memory_space=pltpu.MemorySpace.VMEM)


# ------------------------------- the kernel --------------------------------

def _make_kernel(net_depth, skip_in_flags, has_rest, has_skip, out_has_skip):
    """Build a Pallas kernel for a fixed ElasticMLP layer structure.

    Ref order:
      x_ref       (tm, input_dim)          f32   batch tile (raw, unpadded)
      w0_ref      (input_dim, W_pad)       bf16  layer-0 weight (transposed)
      [wrest_ref] (D-1, W_pad, W_pad)      bf16  layers 1..D-1 (h part)
      b_ref       (D, 1, W_pad)            f32   hidden biases (zero padded)
      [wskip_ref] (n_skip, input_dim, W_pad) bf16  skip-input weight slices
      wout_h_ref  (W_pad, output_dim)      bf16  output weight (h part)
      [wout_x_ref](input_dim, output_dim)  bf16  output weight (skip part)
      bout_ref    (1, output_dim)          f32
      out_ref     (tm, output_dim)         f32
    """

    def kernel(*refs):
        it = iter(refs)
        x_ref = next(it)
        w0_ref = next(it)
        wrest_ref = next(it) if has_rest else None
        b_ref = next(it)
        wskip_ref = next(it) if has_skip else None
        wout_h_ref = next(it)
        wout_x_ref = next(it) if out_has_skip else None
        bout_ref = next(it)
        out_ref = next(it)

        def load_x():
            # Re-load x at each use site (cheap VMEM vld) instead of holding
            # it live across the whole unrolled depth chain.
            return x_ref[...].astype(jnp.bfloat16)

        # layer 0
        acc = jnp.dot(load_x(), w0_ref[...], preferred_element_type=jnp.float32)
        h = jnp.maximum(acc + b_ref[0], 0.0).astype(jnp.bfloat16)

        # layers 1 .. D-1 (skip concat replaced by a second accumulating dot)
        j = 0
        for i in range(1, net_depth):
            acc = jnp.dot(h, wrest_ref[i - 1],
                          preferred_element_type=jnp.float32)
            if skip_in_flags[i]:
                acc = acc + jnp.dot(load_x(), wskip_ref[j],
                                    preferred_element_type=jnp.float32)
                j += 1
            h = jnp.maximum(acc + b_ref[i], 0.0).astype(jnp.bfloat16)

        # output layer (Identity activation)
        y = jnp.dot(h, wout_h_ref[...], preferred_element_type=jnp.float32)
        if out_has_skip:
            y = y + jnp.dot(load_x(), wout_x_ref[...],
                            preferred_element_type=jnp.float32)
        out_ref[...] = y + bout_ref[...]

    return kernel


# ------------------------------- the wrapper --------------------------------

def elastic_mlp_forward(x, weights, biases, out_weight, out_bias,
                        skip_layer, *, tile_m: int = 512):
    """ElasticMLP forward with a Pallas TPU kernel.

    x:          (N, input_dim) float32
    weights:    list of hidden weights, each (out_i, in_i)   (PyTorch layout)
    biases:     list of hidden biases,  each (out_i,)
    out_weight: (output_dim, in_last)
    out_bias:   (output_dim,)
    """
    x = jnp.asarray(x)
    n, input_dim = x.shape
    net_depth = len(weights)
    net_width = int(weights[0].shape[0])
    output_dim = int(out_weight.shape[0])

    # The original module assumes skip_layer is None or >= 1 (i % 0 would
    # raise); normalize <= 0 to "no skip".
    if skip_layer is not None and skip_layer <= 0:
        skip_layer = None

    def _skip_after(i):
        return skip_layer is not None and i % skip_layer == 0 and i > 0

    # layer i's *input* includes the skip concat iff a skip happened after i-1
    skip_in_flags = tuple([False] + [_skip_after(i - 1)
                                     for i in range(1, net_depth)])
    out_has_skip = _skip_after(net_depth - 1)
    n_hidden_skips = int(sum(skip_in_flags))
    has_rest = net_depth > 1
    has_skip = n_hidden_skips > 0

    w_pad = _round_up(net_width, 128)     # lane-dense hidden width

    def pad2(a, rows, cols):
        return jnp.pad(a, ((0, rows - a.shape[0]), (0, cols - a.shape[1])))

    # ---- pack parameters: bf16 matmul operands, f32 biases ----
    w0 = pad2(jnp.asarray(weights[0], jnp.float32).T,
              input_dim, w_pad).astype(jnp.bfloat16)            # (in, Wp)

    rest_list, skip_list, b_list = [], [], []
    for i in range(net_depth):
        b = jnp.asarray(biases[i], jnp.float32).reshape(1, -1)
        b_list.append(jnp.pad(b, ((0, 0), (0, w_pad - net_width))))
        if i == 0:
            continue
        wt = jnp.asarray(weights[i], jnp.float32).T              # (in_i, W)
        rest_list.append(pad2(wt[:net_width, :], w_pad, w_pad))  # acts on h
        if skip_in_flags[i]:
            skip_list.append(pad2(wt[net_width:, :], input_dim, w_pad))
    b_stack = jnp.stack(b_list)                                  # (D, 1, Wp)
    w_rest = (jnp.stack(rest_list).astype(jnp.bfloat16)
              if has_rest else None)                             # (D-1, Wp, Wp)
    w_skip = (jnp.stack(skip_list).astype(jnp.bfloat16)
              if has_skip else None)                             # (ns, in, Wp)

    wot = jnp.asarray(out_weight, jnp.float32).T                 # (in_last, out)
    if out_has_skip:
        w_out_h = pad2(wot[:net_width, :], w_pad, output_dim).astype(jnp.bfloat16)
        w_out_x = jnp.asarray(wot[net_width:, :]).astype(jnp.bfloat16)
    else:
        w_out_h = pad2(wot, w_pad, output_dim).astype(jnp.bfloat16)
        w_out_x = None
    b_out = jnp.asarray(out_bias, jnp.float32).reshape(1, -1)    # (1, out)

    params = [w0, b_stack, w_out_h, b_out]
    if has_rest:
        params.append(w_rest)
    if has_skip:
        params.append(w_skip)
    if out_has_skip:
        params.append(w_out_x)
    weight_bytes = int(sum(int(p.size) * p.dtype.itemsize for p in params))

    # ---- batch tiling: VMEM-budgeted, generation-aware grid steps ----
    budget = _vmem_budget_bytes()
    per_row = (2 * 4 * input_dim          # double-buffered f32 x tile
               + 2 * 4 * output_dim       # double-buffered f32 out tile
               + 4 * 4 * w_pad            # f32 acc + bf16 h + temporaries
               + 2 * input_dim)           # bf16 x copy
    avail = budget - weight_bytes - (2 << 20)
    tm_cap = 128
    if avail > 0:
        tm_cap = max(128, (avail // per_row) // 128 * 128)

    min_steps = _min_grid_steps()
    tm = max(8, _round_up(int(tile_m), 8))
    tm = min(tm, tm_cap)
    tm = min(tm, max(128, _round_up(_cdiv(n, min_steps), 128)))
    tm = min(tm, _round_up(max(n, 1), 8))   # tiny batches: a single exact tile
    grid = (_cdiv(n, tm),)

    # ---- specs: x is blocked over the batch; parameters are VMEM-resident ----
    inputs = [x, w0]
    in_specs = [pl.BlockSpec((tm, input_dim), lambda i: (i, 0)), _vmem_spec()]
    if has_rest:
        inputs.append(w_rest)
        in_specs.append(_vmem_spec())
    inputs.append(b_stack)
    in_specs.append(_vmem_spec())
    if has_skip:
        inputs.append(w_skip)
        in_specs.append(_vmem_spec())
    inputs.append(w_out_h)
    in_specs.append(_vmem_spec())
    if out_has_skip:
        inputs.append(w_out_x)
        in_specs.append(_vmem_spec())
    inputs.append(b_out)
    in_specs.append(_vmem_spec())

    # ---- cost estimate (advisory, helps XLA schedule around the call) ----
    flops = 2 * n * (input_dim * w_pad
                     + (net_depth - 1) * w_pad * w_pad
                     + n_hidden_skips * input_dim * w_pad
                     + w_pad * output_dim
                     + (input_dim * output_dim if out_has_skip else 0))
    bytes_accessed = n * input_dim * 4 + weight_bytes + n * output_dim * 4

    kernel = _make_kernel(net_depth, skip_in_flags, has_rest, has_skip,
                          out_has_skip)

    fn = pl.pallas_call(
        kernel,
        out_shape=jax.ShapeDtypeStruct((n, output_dim), jnp.float32),
        grid_spec=pltpu.PrefetchScalarGridSpec(
            num_scalar_prefetch=0,
            grid=grid,
            in_specs=in_specs,
            out_specs=pl.BlockSpec((tm, output_dim), lambda i: (i, 0)),
        ),
        compiler_params=pltpu.CompilerParams(
            dimension_semantics=("parallel",),
            vmem_limit_bytes=int(budget)),
        cost_estimate=pl.CostEstimate(
            flops=int(flops), transcendentals=0,
            bytes_accessed=int(bytes_accessed)),
    )
    y = fn(*inputs)
    return y.astype(x.dtype)


# ------------------------ parameter construction ---------------------------

def _xavier_uniform(key, shape):
    fan_out, fan_in = shape
    bound = math.sqrt(6.0 / (fan_in + fan_out))
    return jax.random.uniform(key, shape, jnp.float32, -bound, bound)


def build_elastic_mlp_params(key, input_dim, output_dim, net_depth,
                             net_width, skip_layer):
    """Parameter construction mirroring ElasticMLP.__init__ (full width).

    Note: the module's default bias_init is zeros_; small random biases are
    used here purely so the bias-add path is exercised non-trivially.
    """
    weights, biases = [], []
    in_features = input_dim
    keys = jax.random.split(key, 2 * (net_depth + 1))
    for i in range(net_depth):
        layer_width = net_width
        weights.append(_xavier_uniform(keys[2 * i], (layer_width, in_features)))
        biases.append(0.1 * jax.random.normal(keys[2 * i + 1],
                                              (layer_width,), jnp.float32))
        if skip_layer is not None and i % skip_layer == 0 and i > 0:
            in_features = layer_width + input_dim
        else:
            in_features = layer_width
    out_w = _xavier_uniform(keys[2 * net_depth], (output_dim, in_features))
    out_b = 0.1 * jax.random.normal(keys[2 * net_depth + 1],
                                    (output_dim,), jnp.float32)
    return weights, biases, out_w, out_b


# ------------------------------- references --------------------------------

def reference_forward_f32(x, weights, biases, out_w, out_b, skip_layer):
    hp = jax.lax.Precision.HIGHEST
    inputs = x
    h = x
    for i, (w, b) in enumerate(zip(weights, biases)):
        h = jnp.maximum(jnp.dot(h, w.T, precision=hp) + b, 0.0)
        if skip_layer is not None and i % skip_layer == 0 and i > 0:
            h = jnp.concatenate([h, inputs], axis=-1)
    return jnp.dot(h, out_w.T, precision=hp) + out_b


def reference_forward_bf16(x, weights, biases, out_w, out_b, skip_layer):
    """Mimics the kernel's numerics: bf16 matmul operands, f32 accumulation."""
    def mm(a, wt):
        return jnp.dot(a.astype(jnp.bfloat16), wt.astype(jnp.bfloat16),
                       preferred_element_type=jnp.float32)
    inputs = x
    h = x
    for i, (w, b) in enumerate(zip(weights, biases)):
        h = jnp.maximum(mm(h, w.T) + b, 0.0)
        if skip_layer is not None and i % skip_layer == 0 and i > 0:
            h = jnp.concatenate([h, inputs], axis=-1)
    return mm(h, out_w.T) + out_b


# ---------------------------------- main ------------------------------------

if __name__ == "__main__":
    configs = [
        # hidden-layer skip concat (split-weight path in the kernel)
        dict(input_dim=32, output_dim=16, net_depth=4, net_width=64,
             skip_layer=2, n=256),
        # skip concat feeds the *output* layer; ragged batch; odd input_dim
        dict(input_dim=24, output_dim=8, net_depth=5, net_width=32,
             skip_layer=4, n=200),
        # no skip at all; tiny batch (single exact tile)
        dict(input_dim=16, output_dim=4, net_depth=3, net_width=64,
             skip_layer=None, n=64),
    ]

    key = jax.random.PRNGKey(0)
    for cfg in configs:
        key, k_x, k_p = jax.random.split(key, 3)
        x = jax.random.normal(k_x, (cfg["n"], cfg["input_dim"]), jnp.float32)
        weights, biases, out_w, out_b = build_elastic_mlp_params(
            k_p, cfg["input_dim"], cfg["output_dim"], cfg["net_depth"],
            cfg["net_width"], cfg["skip_layer"])

        y = elastic_mlp_forward(x, weights, biases, out_w, out_b,
                                cfg["skip_layer"])
        y = jax.block_until_ready(y)
        assert y.shape == (cfg["n"], cfg["output_dim"])

        # tight check against a reference with the same bf16-operand numerics
        y_bf16 = reference_forward_bf16(x, weights, biases, out_w, out_b,
                                        cfg["skip_layer"])
        assert jnp.allclose(y, y_bf16, atol=2e-3, rtol=2e-3), \
            f"mismatch vs bf16-operand reference for {cfg}"

        # loose sanity check against the full-precision f32 reference
        y_f32 = reference_forward_f32(x, weights, biases, out_w, out_b,
                                      cfg["skip_layer"])
        rel = float(jnp.max(jnp.abs(y - y_f32)) /
                    (jnp.max(jnp.abs(y_f32)) + 1e-6))
        assert rel < 5e-2, f"bf16 drift too large ({rel}) for {cfg}"

    print("KERNEL_OK")
</pallas_src>

<mosaic_0001>
module attributes {stable_mosaic.version = 11 : i64} {
  func.func @kernel(%arg0: i32, %arg1: memref<128x32xf32, #tpu.memory_space<vmem>>, %arg2: memref<32x128xbf16, #tpu.memory_space<vmem>>, %arg3: memref<3x128x128xbf16, #tpu.memory_space<vmem>>, %arg4: memref<4x1x128xf32, #tpu.memory_space<vmem>>, %arg5: memref<1x32x128xbf16, #tpu.memory_space<vmem>>, %arg6: memref<128x16xbf16, #tpu.memory_space<vmem>>, %arg7: memref<1x16xf32, #tpu.memory_space<vmem>>, %arg8: memref<128x16xf32, #tpu.memory_space<vmem>>) attributes {dimension_semantics = [#tpu.dimension_semantics<parallel>], iteration_bounds = array<i64: 2>, scalar_prefetch = 0 : i64, scratch_operands = 0 : i64, tpu.core_type = #tpu.core_type<tc>, window_params = [{transform_indices = @transform_0, window_bounds = array<i64: 128, 32>}, {pipeline_mode = #tpu.pipeline_mode<synchronous>, transform_indices = @transform_1, window_bounds = array<i64: 32, 128>}, {pipeline_mode = #tpu.pipeline_mode<synchronous>, transform_indices = @transform_2, window_bounds = array<i64: 3, 128, 128>}, {pipeline_mode = #tpu.pipeline_mode<synchronous>, transform_indices = @transform_3, window_bounds = array<i64: 4, 1, 128>}, {pipeline_mode = #tpu.pipeline_mode<synchronous>, transform_indices = @transform_4, window_bounds = array<i64: 1, 32, 128>}, {pipeline_mode = #tpu.pipeline_mode<synchronous>, transform_indices = @transform_5, window_bounds = array<i64: 128, 16>}, {pipeline_mode = #tpu.pipeline_mode<synchronous>, transform_indices = @transform_6, window_bounds = array<i64: 1, 16>}, {transform_indices = @transform_7, window_bounds = array<i64: 128, 16>}]} {
    %c0 = arith.constant 0 : index
    %c0_0 = arith.constant 0 : index
    %0 = vector.load %arg1[%c0, %c0_0] : memref<128x32xf32, #tpu.memory_space<vmem>>, vector<128x32xf32>
    %1 = arith.truncf %0 : vector<128x32xf32> to vector<128x32xbf16>
    %c0_1 = arith.constant 0 : index
    %c0_2 = arith.constant 0 : index
    %2 = vector.load %arg2[%c0_1, %c0_2] : memref<32x128xbf16, #tpu.memory_space<vmem>>, vector<32x128xbf16>
    %cst = arith.constant dense<0.000000e+00> : vector<128x128xf32>
    %3 = tpu.matmul %1, %2, %cst {dimension_numbers = #tpu.dot_dimension_numbers<[1], [0], [0], [1], [0, 0, 1, 1], [], []>} : vector<128x32xbf16>, vector<32x128xbf16>, vector<128x128xf32> -> vector<128x128xf32>
    %c0_3 = arith.constant 0 : index
    %c0_4 = arith.constant 0 : index
    %c0_5 = arith.constant 0 : index
    %4 = vector.load %arg4[%c0_3, %c0_4, %c0_5] : memref<4x1x128xf32, #tpu.memory_space<vmem>>, vector<1x1x128xf32>
    %5 = vector.shape_cast %4 : vector<1x1x128xf32> to vector<1x128xf32>
    %6 = vector.broadcast %5 : vector<1x128xf32> to vector<128x128xf32>
    %7 = arith.addf %3, %6 : vector<128x128xf32>
    %cst_6 = arith.constant 0.000000e+00 : f32
    %8 = vector.broadcast %cst_6 : f32 to vector<128x128xf32>
    %9 = arith.maximumf %7, %8 : vector<128x128xf32>
    %10 = arith.truncf %9 : vector<128x128xf32> to vector<128x128xbf16>
    %c0_7 = arith.constant 0 : index
    %c0_8 = arith.constant 0 : index
    %c0_9 = arith.constant 0 : index
    %11 = vector.load %arg3[%c0_7, %c0_8, %c0_9] : memref<3x128x128xbf16, #tpu.memory_space<vmem>>, vector<1x128x128xbf16>
    %12 = vector.shape_cast %11 : vector<1x128x128xbf16> to vector<128x128xbf16>
    %cst_10 = arith.constant dense<0.000000e+00> : vector<128x128xf32>
    %13 = tpu.matmul %10, %12, %cst_10 {dimension_numbers = #tpu.dot_dimension_numbers<[1], [0], [0], [1], [0, 0, 1, 1], [], []>} : vector<128x128xbf16>, vector<128x128xbf16>, vector<128x128xf32> -> vector<128x128xf32>
    %c1 = arith.constant 1 : index
    %c0_11 = arith.constant 0 : index
    %c0_12 = arith.constant 0 : index
    %14 = vector.load %arg4[%c1, %c0_11, %c0_12] : memref<4x1x128xf32, #tpu.memory_space<vmem>>, vector<1x1x128xf32>
    %15 = vector.shape_cast %14 : vector<1x1x128xf32> to vector<1x128xf32>
    %16 = vector.broadcast %15 : vector<1x128xf32> to vector<128x128xf32>
    %17 = arith.addf %13, %16 : vector<128x128xf32>
    %cst_13 = arith.constant 0.000000e+00 : f32
    %18 = vector.broadcast %cst_13 : f32 to vector<128x128xf32>
    %19 = arith.maximumf %17, %18 : vector<128x128xf32>
    %20 = arith.truncf %19 : vector<128x128xf32> to vector<128x128xbf16>
    %c1_14 = arith.constant 1 : index
    %c0_15 = arith.constant 0 : index
    %c0_16 = arith.constant 0 : index
    %21 = vector.load %arg3[%c1_14, %c0_15, %c0_16] : memref<3x128x128xbf16, #tpu.memory_space<vmem>>, vector<1x128x128xbf16>
    %22 = vector.shape_cast %21 : vector<1x128x128xbf16> to vector<128x128xbf16>
    %cst_17 = arith.constant dense<0.000000e+00> : vector<128x128xf32>
    %23 = tpu.matmul %20, %22, %cst_17 {dimension_numbers = #tpu.dot_dimension_numbers<[1], [0], [0], [1], [0, 0, 1, 1], [], []>} : vector<128x128xbf16>, vector<128x128xbf16>, vector<128x128xf32> -> vector<128x128xf32>
    %c2 = arith.constant 2 : index
    %c0_18 = arith.constant 0 : index
    %c0_19 = arith.constant 0 : index
    %24 = vector.load %arg4[%c2, %c0_18, %c0_19] : memref<4x1x128xf32, #tpu.memory_space<vmem>>, vector<1x1x128xf32>
    %25 = vector.shape_cast %24 : vector<1x1x128xf32> to vector<1x128xf32>
    %26 = vector.broadcast %25 : vector<1x128xf32> to vector<128x128xf32>
    %27 = arith.addf %23, %26 : vector<128x128xf32>
    %cst_20 = arith.constant 0.000000e+00 : f32
    %28 = vector.broadcast %cst_20 : f32 to vector<128x128xf32>
    %29 = arith.maximumf %27, %28 : vector<128x128xf32>
    %30 = arith.truncf %29 : vector<128x128xf32> to vector<128x128xbf16>
    %c2_21 = arith.constant 2 : index
    %c0_22 = arith.constant 0 : index
    %c0_23 = arith.constant 0 : index
    %31 = vector.load %arg3[%c2_21, %c0_22, %c0_23] : memref<3x128x128xbf16, #tpu.memory_space<vmem>>, vector<1x128x128xbf16>
    %32 = vector.shape_cast %31 : vector<1x128x128xbf16> to vector<128x128xbf16>
    %cst_24 = arith.constant dense<0.000000e+00> : vector<128x128xf32>
    %33 = tpu.matmul %30, %32, %cst_24 {dimension_numbers = #tpu.dot_dimension_numbers<[1], [0], [0], [1], [0, 0, 1, 1], [], []>} : vector<128x128xbf16>, vector<128x128xbf16>, vector<128x128xf32> -> vector<128x128xf32>
    %c0_25 = arith.constant 0 : index
    %c0_26 = arith.constant 0 : index
    %34 = vector.load %arg1[%c0_25, %c0_26] : memref<128x32xf32, #tpu.memory_space<vmem>>, vector<128x32xf32>
    %35 = arith.truncf %34 : vector<128x32xf32> to vector<128x32xbf16>
    %c0_27 = arith.constant 0 : index
    %c0_28 = arith.constant 0 : index
    %c0_29 = arith.constant 0 : index
    %36 = vector.load %arg5[%c0_27, %c0_28, %c0_29] : memref<1x32x128xbf16, #tpu.memory_space<vmem>>, vector<1x32x128xbf16>
    %37 = vector.shape_cast %36 : vector<1x32x128xbf16> to vector<32x128xbf16>
    %cst_30 = arith.constant dense<0.000000e+00> : vector<128x128xf32>
    %38 = tpu.matmul %35, %37, %cst_30 {dimension_numbers = #tpu.dot_dimension_numbers<[1], [0], [0], [1], [0, 0, 1, 1], [], []>} : vector<128x32xbf16>, vector<32x128xbf16>, vector<128x128xf32> -> vector<128x128xf32>
    %39 = arith.addf %33, %38 : vector<128x128xf32>
    %c3 = arith.constant 3 : index
    %c0_31 = arith.constant 0 : index
    %c0_32 = arith.constant 0 : index
    %40 = vector.load %arg4[%c3, %c0_31, %c0_32] : memref<4x1x128xf32, #tpu.memory_space<vmem>>, vector<1x1x128xf32>
    %41 = vector.shape_cast %40 : vector<1x1x128xf32> to vector<1x128xf32>
    %42 = vector.broadcast %41 : vector<1x128xf32> to vector<128x128xf32>
    %43 = arith.addf %39, %42 : vector<128x128xf32>
    %cst_33 = arith.constant 0.000000e+00 : f32
    %44 = vector.broadcast %cst_33 : f32 to vector<128x128xf32>
    %45 = arith.maximumf %43, %44 : vector<128x128xf32>
    %46 = arith.truncf %45 : vector<128x128xf32> to vector<128x128xbf16>
    %c0_34 = arith.constant 0 : index
    %c0_35 = arith.constant 0 : index
    %47 = vector.load %arg6[%c0_34, %c0_35] : memref<128x16xbf16, #tpu.memory_space<vmem>>, vector<128x16xbf16>
    %cst_36 = arith.constant dense<0.000000e+00> : vector<128x16xf32>
    %48 = tpu.matmul %46, %47, %cst_36 {dimension_numbers = #tpu.dot_dimension_numbers<[1], [0], [0], [1], [0, 0, 1, 1], [], []>} : vector<128x128xbf16>, vector<128x16xbf16>, vector<128x16xf32> -> vector<128x16xf32>
    %c0_37 = arith.constant 0 : index
    %c0_38 = arith.constant 0 : index
    %49 = vector.load %arg7[%c0_37, %c0_38] : memref<1x16xf32, #tpu.memory_space<vmem>>, vector<1x16xf32>
    %50 = vector.broadcast %49 : vector<1x16xf32> to vector<128x16xf32>
    %51 = arith.addf %48, %50 : vector<128x16xf32>
    %c0_39 = arith.constant 0 : index
    %c0_40 = arith.constant 0 : index
    %52 = vector.load %arg8[%c0_39, %c0_40] : memref<128x16xf32, #tpu.memory_space<vmem>>, vector<128x16xf32>
    tpu.vector_store %arg8[%c0_39, %c0_40], %51 {strides = array<i32>} : memref<128x16xf32, #tpu.memory_space<vmem>>, vector<128x16xf32>,
    return
  }
  func.func @transform_0(%arg0: i32) -> (i32, i32) {
    %c0_i32 = arith.constant 0 : i32
    %c0_i32_0 = arith.constant 0 : i32
    return %arg0, %c0_i32 : i32, i32
  }
  func.func @transform_1(%arg0: i32) -> (i32, i32) {
    %c0_i32 = arith.constant 0 : i32
    %c0_i32_0 = arith.constant 0 : i32
    %c0_i32_1 = arith.constant 0 : i32
    return %c0_i32, %c0_i32_0 : i32, i32
  }
  func.func @transform_2(%arg0: i32) -> (i32, i32, i32) {
    %c0_i32 = arith.constant 0 : i32
    %c0_i32_0 = arith.constant 0 : i32
    %c0_i32_1 = arith.constant 0 : i32
    %c0_i32_2 = arith.constant 0 : i32
    return %c0_i32, %c0_i32_0, %c0_i32_1 : i32, i32, i32
  }
  func.func @transform_3(%arg0: i32) -> (i32, i32, i32) {
    %c0_i32 = arith.constant 0 : i32
    %c0_i32_0 = arith.constant 0 : i32
    %c0_i32_1 = arith.constant 0 : i32
    %c0_i32_2 = arith.constant 0 : i32
    return %c0_i32, %c0_i32_0, %c0_i32_1 : i32, i32, i32
  }
  func.func @transform_4(%arg0: i32) -> (i32, i32, i32) {
    %c0_i32 = arith.constant 0 : i32
    %c0_i32_0 = arith.constant 0 : i32
    %c0_i32_1 = arith.constant 0 : i32
    %c0_i32_2 = arith.constant 0 : i32
    return %c0_i32, %c0_i32_0, %c0_i32_1 : i32, i32, i32
  }
  func.func @transform_5(%arg0: i32) -> (i32, i32) {
    %c0_i32 = arith.constant 0 : i32
    %c0_i32_0 = arith.constant 0 : i32
    %c0_i32_1 = arith.constant 0 : i32
    return %c0_i32, %c0_i32_0 : i32, i32
  }
  func.func @transform_6(%arg0: i32) -> (i32, i32) {
    %c0_i32 = arith.constant 0 : i32
    %c0_i32_0 = arith.constant 0 : i32
    %c0_i32_1 = arith.constant 0 : i32
    return %c0_i32, %c0_i32_0 : i32, i32
  }
  func.func @transform_7(%arg0: i32) -> (i32, i32) {
    %c0_i32 = arith.constant 0 : i32
    %c0_i32_0 = arith.constant 0 : i32
    return %arg0, %c0_i32 : i32, i32
  }
}

</mosaic_0001>

<llo_original>
// kernel: tpu_custom_call.1
$region0: #{tpu_custom_call.1}
  #allocation0 [shape = 'u32[]', space=smem, size = 0x4, offset = 0x4, fixed_abs, tag = 'smem constant byte address 0x4 - core index']
  #allocation1 [shape = 'u32[144,128]{1,0:T(1,128)}', space=vmem, size = 0x12000, scoped, tag = 'internal scratch']
  %s0 = inlined_call_operand.vmem [shape: f32[256,32], index: 0, kind: input, shape index: {}]
  %s1 = inlined_call_operand.vmem [shape: bf16[32,128], index: 1, kind: input, shape index: {}]
  %s2 = inlined_call_operand.vmem [shape: bf16[3,128,128], index: 2, kind: input, shape index: {}]
  %s3 = inlined_call_operand.vmem [shape: f32[4,1,128], index: 3, kind: input, shape index: {}]
  %s4 = inlined_call_operand.vmem [shape: bf16[1,32,128], index: 4, kind: input, shape index: {}]
  %s5 = inlined_call_operand.vmem [shape: bf16[128,16], index: 5, kind: input, shape index: {}]
  %s6 = inlined_call_operand.vmem [shape: f32[1,16], index: 6, kind: input, shape index: {}]
  %s7 = inlined_call_operand.vmem [shape: f32[256,16], index: 7, kind: output, shape index: {}]
  %s8 = sld [smem:[#allocation0]]
  $region61: #{tpu_custom_call.1} parent=0
    _
  %s10 = ssub.s32 1, %s8
  %s11 = scalar_select 0, %s10, %s8
  loop: start=0, step=1, limit=4
  $region2: #{tpu_custom_call.1} parent=0 // loop_pre_header
    _
  $region3: #{tpu_custom_call.1} parent=0 // loop_header
    %s13 = sphi 0, %s17
    %p14 = scmp.ge.s32.totalorder %s13, 4
    %s23 = sphi 0, %s25
    %s26 = sphi 0, %s23
    %s27 = sphi 0, %s26
    %s43 = sphi 0, %s27
    %s47 = sphi 0, %s47
    %s49 = sphi 0, %s47
    %s50 = sphi 0, %s49
    %s64 = sphi 0, %s50
    %s68 = sphi 0, %s68
    %s70 = sphi 0, %s68
    %s71 = sphi 0, %s70
    %s85 = sphi 0, %s71
    %s89 = sphi 0, %s89
    %s91 = sphi 0, %s89
    %s92 = sphi 0, %s91
    %s106 = sphi 0, %s92
    %s110 = sphi 0, %s110
    %s112 = sphi 0, %s110
    %s113 = sphi 0, %s112
    %s127 = sphi 0, %s113
    %s131 = sphi 0, %s131
    %s133 = sphi 0, %s131
    %s134 = sphi 0, %s133
    %s148 = sphi 0, %s134
    %s152 = sphi 0, %s152
    %s154 = sphi 0, %s152
    %s155 = sphi 0, %s154
    %s169 = sphi 0, %s155
    %s175 = sphi 0, %s177
    %s178 = sphi 0, %s175
    %s179 = sphi 0, %s178
    %s195 = sphi 0, %s179
  $region4: #{tpu_custom_call.1} parent=0 // loop_header_branch
    %16 = sbr.rel (%p14) target = $region8
  $region5: #{tpu_custom_call.1} parent=0 // loop_body
    %s18 = ssub.s32 %s13, 1
    %s19 = ssub.s32 %s13, 2
    %s20 = sadd.s32 %s13, 1
    %s21 = ssub.s32 %s13, %s20
    %p22 = scmp.eq.s32.totalorder %s21, 0
    %s24 = sadd.s32 %s23, 1
    %s25 = scalar_select %p22, %s23, %s24
    %p28 = pneg %p22
    %p29 = scmp.eq.s32.totalorder %s13, 1
    %p30 = por %p28, %p29
    %p31 = scmp.ne.s32.totalorder %s23, %s26
    %p32 = scmp.eq.s32.totalorder %s13, 0
    %p33 = por %p31, %p32
    %p34 = scmp.ne.s32.totalorder %s23, %s26
    %p35 = scmp.eq.s32.totalorder %s18, 1
    %p36 = por %p34, %p35
    %p37 = scmp.ne.s32.totalorder %s26, %s27
    %p38 = scmp.eq.s32.totalorder %s18, 0
    %p39 = por %p37, %p38
    %p40 = scmp.ne.s32.totalorder %s26, %s27
    %p41 = scmp.eq.s32.totalorder %s19, 1
    %p42 = por %p40, %p41
    %p44 = scmp.ne.s32.totalorder %s27, %s43
    %p45 = scmp.eq.s32.totalorder %s19, 0
    %p46 = por %p44, %p45
    %s48 = sadd.s32 %s47, 1
    %p51 = scmp.eq.s32.totalorder %s13, 1
    %p52 = scmp.ne.s32.totalorder %s47, %s49
    %p53 = scmp.eq.s32.totalorder %s13, 0
    %p54 = por %p52, %p53
    %p55 = scmp.ne.s32.totalorder %s47, %s49
    %p56 = scmp.eq.s32.totalorder %s18, 1
    %p57 = por %p55, %p56
    %p58 = scmp.ne.s32.totalorder %s49, %s50
    %p59 = scmp.eq.s32.totalorder %s18, 0
    %p60 = por %p58, %p59
    %p61 = scmp.ne.s32.totalorder %s49, %s50
    %p62 = scmp.eq.s32.totalorder %s19, 1
    %p63 = por %p61, %p62
    %p65 = scmp.ne.s32.totalorder %s50, %s64
    %p66 = scmp.eq.s32.totalorder %s19, 0
    %p67 = por %p65, %p66
    %s69 = sadd.s32 %s68, 1
    %p72 = scmp.eq.s32.totalorder %s13, 1
    %p73 = scmp.ne.s32.totalorder %s68, %s70
    %p74 = scmp.eq.s32.totalorder %s13, 0
    %p75 = por %p73, %p74
    %p76 = scmp.ne.s32.totalorder %s68, %s70
    %p77 = scmp.eq.s32.totalorder %s18, 1
    %p78 = por %p76, %p77
    %p79 = scmp.ne.s32.totalorder %s70, %s71
    %p80 = scmp.eq.s32.totalorder %s18, 0
    %p81 = por %p79, %p80
    %p82 = scmp.ne.s32.totalorder %s70, %s71
    %p83 = scmp.eq.s32.totalorder %s19, 1
    %p84 = por %p82, %p83
    %p86 = scmp.ne.s32.totalorder %s71, %s85
    %p87 = scmp.eq.s32.totalorder %s19, 0
    %p88 = por %p86, %p87
    %s90 = sadd.s32 %s89, 1
    %p93 = scmp.eq.s32.totalorder %s13, 1
    %p94 = scmp.ne.s32.totalorder %s89, %s91
    %p95 = scmp.eq.s32.totalorder %s13, 0
    %p96 = por %p94, %p95
    %p97 = scmp.ne.s32.totalorder %s89, %s91
    %p98 = scmp.eq.s32.totalorder %s18, 1
    %p99 = por %p97, %p98
    %p100 = scmp.ne.s32.totalorder %s91, %s92
    %p101 = scmp.eq.s32.totalorder %s18, 0
    %p102 = por %p100, %p101
    %p103 = scmp.ne.s32.totalorder %s91, %s92
    %p104 = scmp.eq.s32.totalorder %s19, 1
    %p105 = por %p103, %p104
    %p107 = scmp.ne.s32.totalorder %s92, %s106
    %p108 = scmp.eq.s32.totalorder %s19, 0
    %p109 = por %p107, %p108
    %s111 = sadd.s32 %s110, 1
    %p114 = scmp.eq.s32.totalorder %s13, 1
    %p115 = scmp.ne.s32.totalorder %s110, %s112
    %p116 = scmp.eq.s32.totalorder %s13, 0
    %p117 = por %p115, %p116
    %p118 = scmp.ne.s32.totalorder %s110, %s112
    %p119 = scmp.eq.s32.totalorder %s18, 1
    %p120 = por %p118, %p119
    %p121 = scmp.ne.s32.totalorder %s112, %s113
    %p122 = scmp.eq.s32.totalorder %s18, 0
    %p123 = por %p121, %p122
    %p124 = scmp.ne.s32.totalorder %s112, %s113
    %p125 = scmp.eq.s32.totalorder %s19, 1
    %p126 = por %p124, %p125
    %p128 = scmp.ne.s32.totalorder %s113, %s127
    %p129 = scmp.eq.s32.totalorder %s19, 0
    %p130 = por %p128, %p129
    %s132 = sadd.s32 %s131, 1
    %p135 = scmp.eq.s32.totalorder %s13, 1
    %p136 = scmp.ne.s32.totalorder %s131, %s133
    %p137 = scmp.eq.s32.totalorder %s13, 0
    %p138 = por %p136, %p137
    %p139 = scmp.ne.s32.totalorder %s131, %s133
    %p140 = scmp.eq.s32.totalorder %s18, 1
    %p141 = por %p139, %p140
    %p142 = scmp.ne.s32.totalorder %s133, %s134
    %p143 = scmp.eq.s32.totalorder %s18, 0
    %p144 = por %p142, %p143
    %p145 = scmp.ne.s32.totalorder %s133, %s134
    %p146 = scmp.eq.s32.totalorder %s19, 1
    %p147 = por %p145, %p146
    %p149 = scmp.ne.s32.totalorder %s134, %s148
    %p150 = scmp.eq.s32.totalorder %s19, 0
    %p151 = por %p149, %p150
    %s153 = sadd.s32 %s152, 1
    %p156 = scmp.eq.s32.totalorder %s13, 1
    %p157 = scmp.ne.s32.totalorder %s152, %s154
    %p158 = scmp.eq.s32.totalorder %s13, 0
    %p159 = por %p157, %p158
    %p160 = scmp.ne.s32.totalorder %s152, %s154
    %p161 = scmp.eq.s32.totalorder %s18, 1
    %p162 = por %p160, %p161
    %p163 = scmp.ne.s32.totalorder %s154, %s155
    %p164 = scmp.eq.s32.totalorder %s18, 0
    %p165 = por %p163, %p164
    %p166 = scmp.ne.s32.totalorder %s154, %s155
    %p167 = scmp.eq.s32.totalorder %s19, 1
    %p168 = por %p166, %p167
    %p170 = scmp.ne.s32.totalorder %s155, %s169
    %p171 = scmp.eq.s32.totalorder %s19, 0
    %p172 = por %p170, %p171
    %s173 = ssub.s32 %s13, %s20
    %p174 = scmp.eq.s32.totalorder %s173, 0
    %s176 = sadd.s32 %s175, 1
    %s177 = scalar_select %p174, %s175, %s176
    %p180 = pneg %p174
    %p181 = scmp.eq.s32.totalorder %s13, 1
    %p182 = por %p180, %p181
    %p183 = scmp.ne.s32.totalorder %s175, %s178
    %p184 = scmp.eq.s32.totalorder %s13, 0
    %p185 = por %p183, %p184
    %p186 = scmp.ne.s32.totalorder %s175, %s178
    %p187 = scmp.eq.s32.totalorder %s18, 1
    %p188 = por %p186, %p187
    %p189 = scmp.ne.s32.totalorder %s178, %s179
    %p190 = scmp.eq.s32.totalorder %s18, 0
    %p191 = por %p189, %p190
    %p192 = scmp.ne.s32.totalorder %s178, %s179
    %p193 = scmp.eq.s32.totalorder %s19, 1
    %p194 = por %p192, %p193
    %p196 = scmp.ne.s32.totalorder %s179, %s195
    %p197 = scmp.eq.s32.totalorder %s19, 0
    %p198 = por %p196, %p197
    %p199 = scmp.le.s32.totalorder 1, %s13
    %p200 = scmp.lt.s32.totalorder %s13, 3
    %p201 = pnand %p199, %p200
    %p202 = pneg %p201
    // Predicated region
    $region9: #{tpu_custom_call.1} parent=5 // pred_check
      _
    $region10: #{tpu_custom_call.1} parent=5 // pred_check_branch
      %204 = sbr.rel (%p201) target = $region12
    $region11: #{tpu_custom_call.1} parent=5 // pred_region
      %s205 = ssub.s32 %s13, 1
      // Predicated region
      $region13: #{tpu_custom_call.1} parent=11 // pred_check
        %p206 = pneg %p60
      $region14: #{tpu_custom_call.1} parent=11 // pred_check_branch
        %208 = sbr.rel (%p206) target = $region16
      $region15: #{tpu_custom_call.1} parent=11 // pred_region
        _
      $region16: #{tpu_custom_call.1} parent=11 // pred_fallthru
        _
      // Predicated region
      $region17: #{tpu_custom_call.1} parent=11 // pred_check
        %p209 = pneg %p81
      $region18: #{tpu_custom_call.1} parent=11 // pred_check_branch
        %211 = sbr.rel (%p209) target = $region20
      $region19: #{tpu_custom_call.1} parent=11 // pred_region
        _
      $region20: #{tpu_custom_call.1} parent=11 // pred_fallthru
        _
      // Predicated region
      $region21: #{tpu_custom_call.1} parent=11 // pred_check
        %p212 = pneg %p102
      $region22: #{tpu_custom_call.1} parent=11 // pred_check_branch
        %214 = sbr.rel (%p212) target = $region24
      $region23: #{tpu_custom_call.1} parent=11 // pred_region
        _
      $region24: #{tpu_custom_call.1} parent=11 // pred_fallthru
        _
      // Predicated region
      $region25: #{tpu_custom_call.1} parent=11 // pred_check
        %p215 = pneg %p123
      $region26: #{tpu_custom_call.1} parent=11 // pred_check_branch
        %217 = sbr.rel (%p215) target = $region28
      $region27: #{tpu_custom_call.1} parent=11 // pred_region
        _
      $region28: #{tpu_custom_call.1} parent=11 // pred_fallthru
        _
      // Predicated region
      $region29: #{tpu_custom_call.1} parent=11 // pred_check
        %p218 = pneg %p144
      $region30: #{tpu_custom_call.1} parent=11 // pred_check_branch
        %220 = sbr.rel (%p218) target = $region32
      $region31: #{tpu_custom_call.1} parent=11 // pred_region
        _
      $region32: #{tpu_custom_call.1} parent=11 // pred_fallthru
        _
      // Predicated region
      $region33: #{tpu_custom_call.1} parent=11 // pred_check
        %p221 = pneg %p165
      $region34: #{tpu_custom_call.1} parent=11 // pred_check_branch
        %223 = sbr.rel (%p221) target = $region36
      $region35: #{tpu_custom_call.1} parent=11 // pred_region
        _
      $region36: #{tpu_custom_call.1} parent=11 // pred_fallthru
        _
    $region12: #{tpu_custom_call.1} parent=5 // pred_fallthru
      _
    %p224 = scmp.lt.s32.totalorder %s13, 2
    // Predicated region
    $region37: #{tpu_custom_call.1} parent=5 // pred_check
      %p225 = pneg %p224
    $region38: #{tpu_custom_call.1} parent=5 // pred_check_branch
      %227 = sbr.rel (%p225) target = $region40
    $region39: #{tpu_custom_call.1} parent=5 // pred_region
      // Predicated region
      $region41: #{tpu_custom_call.1} parent=39 // pred_check
        %p228 = pneg %p33
      $region42: #{tpu_custom_call.1} parent=39 // pred_check_branch
        %230 = sbr.rel (%p228) target = $region44
      $region43: #{tpu_custom_call.1} parent=39 // pred_region
        %s231 = smul.u32 16, %s13
        %p232 = scmp.lt.s32.totalorder %s231, 31
        %s233 = scalar_select %p232, %s231, 31
        %s234 = smul.addr %s233, 8
        %s235 = scalar_lea.vmem %s0, %s234
        %s236 = smul.u32 16, %s13
      $region44: #{tpu_custom_call.1} parent=39 // pred_fallthru
        _
    $region40: #{tpu_custom_call.1} parent=5 // pred_fallthru
      _
    %p237 = scmp.le.s32.totalorder 1, %s13
    %p238 = scmp.lt.s32.totalorder %s13, 3
    %p239 = pnand %p237, %p238
    %p240 = pneg %p239
    // Predicated region
    $region45: #{tpu_custom_call.1} parent=5 // pred_check
      _
    $region46: #{tpu_custom_call.1} parent=5 // pred_check_branch
      %242 = sbr.rel (%p239) target = $region48
    $region47: #{tpu_custom_call.1} parent=5 // pred_region
      %s243 = ssub.s32 %s13, 1
      %s244 = smul.u32 16, %s18
      %p245 = scmp.lt.s32.totalorder %s244, 31
      %s246 = scalar_select %p245, %s244, 31
      %s247 = smul.addr %s246, 8
      %s248 = scalar_lea.vmem %s0, %s247
      %p249 = pneg %p39
      %p250 = pneg %p36
      %p251 = pneg %p60
      %p252 = pneg %p57
      %p253 = pneg %p81
      %p254 = pneg %p78
      %p255 = pneg %p102
      %p256 = pneg %p99
      %p257 = pneg %p123
      %p258 = pneg %p120
      %p259 = pneg %p144
      %p260 = pneg %p141
      %p261 = pneg %p165
      %p262 = pneg %p162
      %p263 = pneg %p191
      %p264 = pneg %p188
      %s265 = smul.u32 16, %s18
      %p266 = scmp.lt.s32.totalorder %s265, 31
      %s267 = scalar_select %p266, %s265, 31
      %s268 = smul.addr %s267, 8
      %s269 = scalar_lea.vmem %s7, %s268
      %s270 = smul.u32 16, %s18
      %p271 = scmp.lt.s32.totalorder %s270, 31
      %s272 = scalar_select %p271, %s270, 31
      %s273 = smul.addr %s272, 8
      %s274 = scalar_lea.vmem %s0, %s273
      %s275 = smul.u32 16, %s18
      %s276 = smul.u32 16, %s18
      %p277 = scmp.lt.s32.totalorder %s276, 31
      %s278 = scalar_select %p277, %s276, 31
      %s279 = smul.addr %s278, 8
      %s280 = scalar_lea.vmem %s7, %s279
      %s281 = smul.u32 16, %s18
      %v283 = vld [vmem:[%s274] sm:$0xff]
      %v284 = vld [vmem:[%s274 + $0x8] sm:$0xff]
      %v285 = vld [vmem:[%s274 + $0x10] sm:$0xff]
      %v286 = vld [vmem:[%s274 + $0x18] sm:$0xff]
      %v287 = vld [vmem:[%s274 + $0x20] sm:$0xff]
      %v288 = vld [vmem:[%s274 + $0x28] sm:$0xff]
      %v289 = vld [vmem:[%s274 + $0x30] sm:$0xff]
      %v290 = vld [vmem:[%s274 + $0x38] sm:$0xff]
      %v291 = vld [vmem:[%s274 + $0x40] sm:$0xff]
      %v292 = vld [vmem:[%s274 + $0x48] sm:$0xff]
      %v293 = vld [vmem:[%s274 + $0x50] sm:$0xff]
      %v294 = vld [vmem:[%s274 + $0x58] sm:$0xff]
      %v295 = vld [vmem:[%s274 + $0x60] sm:$0xff]
      %v296 = vld [vmem:[%s274 + $0x68] sm:$0xff]
      %v297 = vld [vmem:[%s274 + $0x70] sm:$0xff]
      %v298 = vld [vmem:[%s274 + $0x78] sm:$0xff]
      %v299 = vpack.c.bf16 %v284, %v283
      %v300 = vpack.c.bf16 %v286, %v285
      %v301 = vpack.c.bf16 %v288, %v287
      %v302 = vpack.c.bf16 %v290, %v289
      %v303 = vpack.c.bf16 %v292, %v291
      %v304 = vpack.c.bf16 %v294, %v293
      %v305 = vpack.c.bf16 %v296, %v295
      %v306 = vpack.c.bf16 %v298, %v297
      %v307 = vld [vmem:[%s1] sm:$0xf]
      %v308 = vld [vmem:[%s1 + $0x4] sm:$0xf]
      %v309 = vld [vmem:[%s1 + $0x8] sm:$0xf]
      %v310 = vld [vmem:[%s1 + $0xc] sm:$0xf]
      %v311 = vld [vmem:[%s3] sm:$0x1]
      %v313 = vlaneseq
      %v314 = vshrl.u32 %v313, 7
      %v315 = vsub.s32 0, %v314
      %v316 = vrot.slane %v311, %v315
      %v322 = vunpack.c.l.b16 %v307
      %v323 = vunpack.c.l.b16 %v308
      %v324 = vunpack.c.l.b16 %v309
      %v325 = vunpack.c.l.b16 %v310
      %v326 = vpack.c.b16 %v323, %v322
      %v327 = vpack.c.b16 %v325, %v324
      %vm330 = vcmask 261120
      %v332 = vsel %vm330, %v299, 0
      %v335 = vsel %vm330, %v300, 0
      %v338 = vsel %vm330, %v301, 0
      %v341 = vsel %vm330, %v302, 0
      %v344 = vsel %vm330, %v303, 0
      %v347 = vsel %vm330, %v304, 0
      %v350 = vsel %vm330, %v305, 0
      %v353 = vsel %vm330, %v306, 0
      %355 = vmatprep.subr.bf16.mxu0 0
      %356 = vmatpush1.bf16.msra.mxu0 0
      %357 = vmatprep.subr.bf16.mxu0 0
      %358 = vmatpush1.bf16.msra.mxu0 0
      %359 = vmatprep.subr.bf16.mxu0 0
      %360 = vmatpush1.bf16.msra.mxu0 0
      %361 = vmatprep.subr.bf16.mxu0 0
      %362 = vmatpush1.bf16.msra.mxu0 0
      %363 = vmatprep.subr.bf16.mxu0 0
      %364 = vmatpush1.bf16.msra.mxu0 0
      %365 = vmatprep.subr.bf16.mxu0 0
      %366 = vmatpush1.bf16.msra.mxu0 0
      %367 = vmatprep.subr.bf16.mxu0 0
      %368 = vmatpush1.bf16.msra.mxu0 %v327
      %369 = vmatprep.subr.bf16.mxu0 0
      %370 = vmatpush1.bf16.msra.mxu0 %v326
      %371 = vmatprep.subr.bf16.mxu0 0
      %372 = vmatpush2.bf16.msra.mxu0 0
      %373 = vmatprep.subr.bf16.mxu0 0
      %374 = vmatpush2.bf16.msra.mxu0 0
      %375 = vmatprep.subr.bf16.mxu0 0
      %376 = vmatpush2.bf16.msra.mxu0 0
      %377 = vmatprep.subr.bf16.mxu0 0
      %378 = vmatpush2.bf16.msra.mxu0 0
      %379 = vmatprep.subr.bf16.mxu0 0
      %380 = vmatpush2.bf16.msra.mxu0 0
      %381 = vmatprep.subr.bf16.mxu0 0
      %382 = vmatpush2.bf16.msra.mxu0 0
      %383 = vmatprep.subr.bf16.mxu0 0
      %384 = vmatpush2.bf16.msra.mxu0 0
      %385 = vmatprep.subr.bf16.mxu0 0
      %386 = vmatpush2.bf16.msra.mxu0 0
      %387 = vmatprep.mubr.bf16.mxu0 0
      %388 = vmatmul.mubr.bf16.gmra.mxu0 %v332
      %v389 = vpop.f32.mrf.mxu0
      %v390 = vadd.f32 %v316, %v389
      %v391 = vpop.f32.mrf.mxu0
      %v392 = vpop.f32.mrf.mxu0
      %v393 = vadd.f32 %v316, %v392
      %v394 = vpop.f32.mrf.mxu0
      %395 = vmatprep.mubr.bf16.mxu0 0
      %396 = vmatmul.mubr.bf16.gmra.mxu0 %v335
      %v397 = vpop.f32.mrf.mxu0
      %v398 = vadd.f32 %v316, %v397
      %v399 = vpop.f32.mrf.mxu0
      %v400 = vpop.f32.mrf.mxu0
      %v401 = vadd.f32 %v316, %v400
      %v402 = vpop.f32.mrf.mxu0
      %403 = vmatprep.mubr.bf16.mxu0 0
      %404 = vmatmul.mubr.bf16.gmra.mxu0 %v338
      %v405 = vpop.f32.mrf.mxu0
      %v406 = vadd.f32 %v316, %v405
      %v407 = vpop.f32.mrf.mxu0
      %v408 = vpop.f32.mrf.mxu0
      %v409 = vadd.f32 %v316, %v408
      %v410 = vpop.f32.mrf.mxu0
      %411 = vmatprep.mubr.bf16.mxu0 0
      %412 = vmatmul.mubr.bf16.gmra.mxu0 %v341
      %v413 = vpop.f32.mrf.mxu0
      %v414 = vadd.f32 %v316, %v413
      %v415 = vpop.f32.mrf.mxu0
      %v416 = vpop.f32.mrf.mxu0
      %v417 = vadd.f32 %v316, %v416
      %v418 = vpop.f32.mrf.mxu0
      %419 = vmatprep.mubr.bf16.mxu0 0
      %420 = vmatmul.mubr.bf16.gmra.mxu0 %v344
      %v421 = vpop.f32.mrf.mxu0
      %v422 = vadd.f32 %v316, %v421
      %v423 = vpop.f32.mrf.mxu0
      %v424 = vpop.f32.mrf.mxu0
      %v425 = vadd.f32 %v316, %v424
      %v426 = vpop.f32.mrf.mxu0
      %427 = vmatprep.mubr.bf16.mxu0 0
      %428 = vmatmul.mubr.bf16.gmra.mxu0 %v347
      %v429 = vpop.f32.mrf.mxu0
      %v430 = vadd.f32 %v316, %v429
      %v431 = vpop.f32.mrf.mxu0
      %v432 = vpop.f32.mrf.mxu0
      %v433 = vadd.f32 %v316, %v432
      %v434 = vpop.f32.mrf.mxu0
      %435 = vmatprep.mubr.bf16.mxu0 0
      %436 = vmatmul.mubr.bf16.gmra.mxu0 %v350
      %v437 = vpop.f32.mrf.mxu0
      %v438 = vadd.f32 %v316, %v437
      %v439 = vpop.f32.mrf.mxu0
      %v440 = vpop.f32.mrf.mxu0
      %v441 = vadd.f32 %v316, %v440
      %v442 = vpop.f32.mrf.mxu0
      %443 = vmatprep.mubr.bf16.mxu0 0
      %444 = vmatmul.mubr.bf16.gmra.mxu0 %v353
      %v445 = vpop.f32.mrf.mxu0
      %v446 = vadd.f32 %v316, %v445
      %v447 = vpop.f32.mrf.mxu0
      %v448 = vpop.f32.mrf.mxu0
      %v449 = vadd.f32 %v316, %v448
      %v450 = vpop.f32.mrf.mxu0
      %451 = vdwg.mxu0
      %v452 = vmax.f32 %v390, 0.0
      %v453 = vmax.f32 %v393, 0.0
      %v454 = vmax.f32 %v398, 0.0
      %v455 = vmax.f32 %v401, 0.0
      %v456 = vmax.f32 %v406, 0.0
      %v457 = vmax.f32 %v409, 0.0
      %v458 = vmax.f32 %v414, 0.0
      %v459 = vmax.f32 %v417, 0.0
      %v460 = vmax.f32 %v422, 0.0
      %v461 = vmax.f32 %v425, 0.0
      %v462 = vmax.f32 %v430, 0.0
      %v463 = vmax.f32 %v433, 0.0
      %v464 = vmax.f32 %v438, 0.0
      %v465 = vmax.f32 %v441, 0.0
      %v466 = vmax.f32 %v446, 0.0
      %v467 = vmax.f32 %v449, 0.0
      %v468 = vpack.c.bf16 %v453, %v452
      %v469 = vpack.c.bf16 %v455, %v454
      %v470 = vpack.c.bf16 %v457, %v456
      %v471 = vpack.c.bf16 %v459, %v458
      %v472 = vpack.c.bf16 %v461, %v460
      %v473 = vpack.c.bf16 %v463, %v462
      %v474 = vpack.c.bf16 %v465, %v464
      %v475 = vpack.c.bf16 %v467, %v466
      %v476 = vld [vmem:[%s2] sm:$0xf]
      %v477 = vld [vmem:[%s2 + $0x4] sm:$0xf]
      %v478 = vld [vmem:[%s2 + $0x8] sm:$0xf]
      %v479 = vld [vmem:[%s2 + $0xc] sm:$0xf]
      %v480 = vld [vmem:[%s2 + $0x10] sm:$0xf]
      %v481 = vld [vmem:[%s2 + $0x14] sm:$0xf]
      %v482 = vld [vmem:[%s2 + $0x18] sm:$0xf]
      %v483 = vld [vmem:[%s2 + $0x1c] sm:$0xf]
      %v484 = vld [vmem:[%s2 + $0x20] sm:$0xf]
      %v485 = vld [vmem:[%s2 + $0x24] sm:$0xf]
      %v486 = vld [vmem:[%s2 + $0x28] sm:$0xf]
      %v487 = vld [vmem:[%s2 + $0x2c] sm:$0xf]
      %v488 = vld [vmem:[%s2 + $0x30] sm:$0xf]
      %v489 = vld [vmem:[%s2 + $0x34] sm:$0xf]
      %v490 = vld [vmem:[%s2 + $0x38] sm:$0xf]
      %v491 = vld [vmem:[%s2 + $0x3c] sm:$0xf]
      %s492 = scalar_lea.vmem %s3, 1
      %v493 = vld [vmem:[%s492] sm:$0x1]
      %v495 = vlaneseq
      %v496 = vshrl.u32 %v495, 7
      %v497 = vsub.s32 0, %v496
      %v498 = vrot.slane %v493, %v497
      %v516 = vunpack.c.l.b16 %v476
      %v517 = vunpack.c.l.b16 %v477
      %v518 = vunpack.c.l.b16 %v478
      %v519 = vunpack.c.l.b16 %v479
      %v520 = vunpack.c.l.b16 %v480
      %v521 = vunpack.c.l.b16 %v481
      %v522 = vunpack.c.l.b16 %v482
      %v523 = vunpack.c.l.b16 %v483
      %v524 = vunpack.c.l.b16 %v484
      %v525 = vunpack.c.l.b16 %v485
      %v526 = vunpack.c.l.b16 %v486
      %v527 = vunpack.c.l.b16 %v487
      %v528 = vunpack.c.l.b16 %v488
      %v529 = vunpack.c.l.b16 %v489
      %v530 = vunpack.c.l.b16 %v490
      %v531 = vunpack.c.l.b16 %v491
      %v532 = vpack.c.b16 %v517, %v516
      %v533 = vpack.c.b16 %v519, %v518
      %v534 = vpack.c.b16 %v521, %v520
      %v535 = vpack.c.b16 %v523, %v522
      %v536 = vpack.c.b16 %v525, %v524
      %v537 = vpack.c.b16 %v527, %v526
      %v538 = vpack.c.b16 %v529, %v528
      %v539 = vpack.c.b16 %v531, %v530
      %548 = vmatprep.subr.bf16.mxu0 0
      %549 = vmatpush1.bf16.msra.mxu0 %v539
      %550 = vmatprep.subr.bf16.mxu0 0
      %551 = vmatpush1.bf16.msra.mxu0 %v538
      %552 = vmatprep.subr.bf16.mxu0 0
      %553 = vmatpush1.bf16.msra.mxu0 %v537
      %554 = vmatprep.subr.bf16.mxu0 0
      %555 = vmatpush1.bf16.msra.mxu0 %v536
      %556 = vmatprep.subr.bf16.mxu0 0
      %557 = vmatpush1.bf16.msra.mxu0 %v535
      %558 = vmatprep.subr.bf16.mxu0 0
      %559 = vmatpush1.bf16.msra.mxu0 %v534
      %560 = vmatprep.subr.bf16.mxu0 0
      %561 = vmatpush1.bf16.msra.mxu0 %v533
      %562 = vmatprep.subr.bf16.mxu0 0
      %563 = vmatpush1.bf16.msra.mxu0 %v532
      %564 = vmatprep.subr.bf16.mxu0 0
      %565 = vmatpush2.bf16.msra.mxu0 0
      %566 = vmatprep.subr.bf16.mxu0 0
      %567 = vmatpush2.bf16.msra.mxu0 0
      %568 = vmatprep.subr.bf16.mxu0 0
      %569 = vmatpush2.bf16.msra.mxu0 0
      %570 = vmatprep.subr.bf16.mxu0 0
      %571 = vmatpush2.bf16.msra.mxu0 0
      %572 = vmatprep.subr.bf16.mxu0 0
      %573 = vmatpush2.bf16.msra.mxu0 0
      %574 = vmatprep.subr.bf16.mxu0 0
      %575 = vmatpush2.bf16.msra.mxu0 0
      %576 = vmatprep.subr.bf16.mxu0 0
      %577 = vmatpush2.bf16.msra.mxu0 0
      %578 = vmatprep.subr.bf16.mxu0 0
      %579 = vmatpush2.bf16.msra.mxu0 0
      %580 = vmatprep.mubr.bf16.mxu0 0
      %581 = vmatmul.mubr.bf16.gmra.mxu0 %v468
      %v582 = vpop.f32.mrf.mxu0
      %v583 = vadd.f32 %v498, %v582
      %v584 = vpop.f32.mrf.mxu0
      %v585 = vpop.f32.mrf.mxu0
      %v586 = vadd.f32 %v498, %v585
      %v587 = vpop.f32.mrf.mxu0
      %588 = vmatprep.mubr.bf16.mxu0 0
      %589 = vmatmul.mubr.bf16.gmra.mxu0 %v469
      %v590 = vpop.f32.mrf.mxu0
      %v591 = vadd.f32 %v498, %v590
      %v592 = vpop.f32.mrf.mxu0
      %v593 = vpop.f32.mrf.mxu0
      %v594 = vadd.f32 %v498, %v593
      %v595 = vpop.f32.mrf.mxu0
      %596 = vmatprep.mubr.bf16.mxu0 0
      %597 = vmatmul.mubr.bf16.gmra.mxu0 %v470
      %v598 = vpop.f32.mrf.mxu0
      %v599 = vadd.f32 %v498, %v598
      %v600 = vpop.f32.mrf.mxu0
      %v601 = vpop.f32.mrf.mxu0
      %v602 = vadd.f32 %v498, %v601
      %v603 = vpop.f32.mrf.mxu0
      %604 = vmatprep.mubr.bf16.mxu0 0
      %605 = vmatmul.mubr.bf16.gmra.mxu0 %v471
      %v606 = vpop.f32.mrf.mxu0
      %v607 = vadd.f32 %v498, %v606
      %v608 = vpop.f32.mrf.mxu0
      %v609 = vpop.f32.mrf.mxu0
      %v610 = vadd.f32 %v498, %v609
      %v611 = vpop.f32.mrf.mxu0
      %612 = vmatprep.mubr.bf16.mxu0 0
      %613 = vmatmul.mubr.bf16.gmra.mxu0 %v472
      %v614 = vpop.f32.mrf.mxu0
      %v615 = vadd.f32 %v498, %v614
      %v616 = vpop.f32.mrf.mxu0
      %v617 = vpop.f32.mrf.mxu0
      %v618 = vadd.f32 %v498, %v617
      %v619 = vpop.f32.mrf.mxu0
      %620 = vmatprep.mubr.bf16.mxu0 0
      %621 = vmatmul.mubr.bf16.gmra.mxu0 %v473
      %v622 = vpop.f32.mrf.mxu0
      %v623 = vadd.f32 %v498, %v622
      %v624 = vpop.f32.mrf.mxu0
      %v625 = vpop.f32.mrf.mxu0
      %v626 = vadd.f32 %v498, %v625
      %v627 = vpop.f32.mrf.mxu0
      %628 = vmatprep.mubr.bf16.mxu0 0
      %629 = vmatmul.mubr.bf16.gmra.mxu0 %v474
      %v630 = vpop.f32.mrf.mxu0
      %v631 = vadd.f32 %v498, %v630
      %v632 = vpop.f32.mrf.mxu0
      %v633 = vpop.f32.mrf.mxu0
      %v634 = vadd.f32 %v498, %v633
      %v635 = vpop.f32.mrf.mxu0
      %636 = vmatprep.mubr.bf16.mxu0 0
      %637 = vmatmul.mubr.bf16.gmra.mxu0 %v475
      %v638 = vpop.f32.mrf.mxu0
      %v639 = vadd.f32 %v498, %v638
      %v640 = vpop.f32.mrf.mxu0
      %v641 = vpop.f32.mrf.mxu0
      %v642 = vadd.f32 %v498, %v641
      %v643 = vpop.f32.mrf.mxu0
      %644 = vdwg.mxu0
      %v645 = vmax.f32 %v583, 0.0
      %v646 = vmax.f32 %v586, 0.0
      %v647 = vmax.f32 %v591, 0.0
      %v648 = vmax.f32 %v594, 0.0
      %v649 = vmax.f32 %v599, 0.0
      %v650 = vmax.f32 %v602, 0.0
      %v651 = vmax.f32 %v607, 0.0
      %v652 = vmax.f32 %v610, 0.0
      %v653 = vmax.f32 %v615, 0.0
      %v654 = vmax.f32 %v618, 0.0
      %v655 = vmax.f32 %v623, 0.0
      %v656 = vmax.f32 %v626, 0.0
      %v657 = vmax.f32 %v631, 0.0
      %v658 = vmax.f32 %v634, 0.0
      %v659 = vmax.f32 %v639, 0.0
      %v660 = vmax.f32 %v642, 0.0
      %v661 = vpack.c.bf16 %v646, %v645
      %v662 = vpack.c.bf16 %v648, %v647
      %v663 = vpack.c.bf16 %v650, %v649
      %v664 = vpack.c.bf16 %v652, %v651
      %v665 = vpack.c.bf16 %v654, %v653
      %v666 = vpack.c.bf16 %v656, %v655
      %v667 = vpack.c.bf16 %v658, %v657
      %v668 = vpack.c.bf16 %v660, %v659
      %s669 = scalar_lea.vmem %s2, 64
      %v670 = vld [vmem:[%s669] sm:$0xf]
      %v671 = vld [vmem:[%s669 + $0x4] sm:$0xf]
      %v672 = vld [vmem:[%s669 + $0x8] sm:$0xf]
      %v673 = vld [vmem:[%s669 + $0xc] sm:$0xf]
      %v674 = vld [vmem:[%s669 + $0x10] sm:$0xf]
      %v675 = vld [vmem:[%s669 + $0x14] sm:$0xf]
      %v676 = vld [vmem:[%s669 + $0x18] sm:$0xf]
      %v677 = vld [vmem:[%s669 + $0x1c] sm:$0xf]
      %v678 = vld [vmem:[%s669 + $0x20] sm:$0xf]
      %v679 = vld [vmem:[%s669 + $0x24] sm:$0xf]
      %v680 = vld [vmem:[%s669 + $0x28] sm:$0xf]
      %v681 = vld [vmem:[%s669 + $0x2c] sm:$0xf]
      %v682 = vld [vmem:[%s669 + $0x30] sm:$0xf]
      %v683 = vld [vmem:[%s669 + $0x34] sm:$0xf]
      %v684 = vld [vmem:[%s669 + $0x38] sm:$0xf]
      %v685 = vld [vmem:[%s669 + $0x3c] sm:$0xf]
      %s686 = scalar_lea.vmem %s3, 2
      %v687 = vld [vmem:[%s686] sm:$0x1]
      %v689 = vlaneseq
      %v690 = vshrl.u32 %v689, 7
      %v691 = vsub.s32 0, %v690
      %v692 = vrot.slane %v687, %v691
      %v710 = vunpack.c.l.b16 %v670
      %v711 = vunpack.c.l.b16 %v671
      %v712 = vunpack.c.l.b16 %v672
      %v713 = vunpack.c.l.b16 %v673
      %v714 = vunpack.c.l.b16 %v674
      %v715 = vunpack.c.l.b16 %v675
      %v716 = vunpack.c.l.b16 %v676
      %v717 = vunpack.c.l.b16 %v677
      %v718 = vunpack.c.l.b16 %v678
      %v719 = vunpack.c.l.b16 %v679
      %v720 = vunpack.c.l.b16 %v680
      %v721 = vunpack.c.l.b16 %v681
      %v722 = vunpack.c.l.b16 %v682
      %v723 = vunpack.c.l.b16 %v683
      %v724 = vunpack.c.l.b16 %v684
      %v725 = vunpack.c.l.b16 %v685
      %v726 = vpack.c.b16 %v711, %v710
      %v727 = vpack.c.b16 %v713, %v712
      %v728 = vpack.c.b16 %v715, %v714
      %v729 = vpack.c.b16 %v717, %v716
      %v730 = vpack.c.b16 %v719, %v718
      %v731 = vpack.c.b16 %v721, %v720
      %v732 = vpack.c.b16 %v723, %v722
      %v733 = vpack.c.b16 %v725, %v724
      %742 = vmatprep.subr.bf16.mxu0 0
      %743 = vmatpush1.bf16.msra.mxu0 %v733
      %744 = vmatprep.subr.bf16.mxu0 0
      %745 = vmatpush1.bf16.msra.mxu0 %v732
      %746 = vmatprep.subr.bf16.mxu0 0
      %747 = vmatpush1.bf16.msra.mxu0 %v731
      %748 = vmatprep.subr.bf16.mxu0 0
      %749 = vmatpush1.bf16.msra.mxu0 %v730
      %750 = vmatprep.subr.bf16.mxu0 0
      %751 = vmatpush1.bf16.msra.mxu0 %v729
      %752 = vmatprep.subr.bf16.mxu0 0
      %753 = vmatpush1.bf16.msra.mxu0 %v728
      %754 = vmatprep.subr.bf16.mxu0 0
      %755 = vmatpush1.bf16.msra.mxu0 %v727
      %756 = vmatprep.subr.bf16.mxu0 0
      %757 = vmatpush1.bf16.msra.mxu0 %v726
      %758 = vmatprep.subr.bf16.mxu0 0
      %759 = vmatpush2.bf16.msra.mxu0 0
      %760 = vmatprep.subr.bf16.mxu0 0
      %761 = vmatpush2.bf16.msra.mxu0 0
      %762 = vmatprep.subr.bf16.mxu0 0
      %763 = vmatpush2.bf16.msra.mxu0 0
      %764 = vmatprep.subr.bf16.mxu0 0
      %765 = vmatpush2.bf16.msra.mxu0 0
      %766 = vmatprep.subr.bf16.mxu0 0
      %767 = vmatpush2.bf16.msra.mxu0 0
      %768 = vmatprep.subr.bf16.mxu0 0
      %769 = vmatpush2.bf16.msra.mxu0 0
      %770 = vmatprep.subr.bf16.mxu0 0
      %771 = vmatpush2.bf16.msra.mxu0 0
      %772 = vmatprep.subr.bf16.mxu0 0
      %773 = vmatpush2.bf16.msra.mxu0 0
      %774 = vmatprep.mubr.bf16.mxu0 0
      %775 = vmatmul.mubr.bf16.gmra.mxu0 %v661
      %v776 = vpop.f32.mrf.mxu0
      %v777 = vadd.f32 %v692, %v776
      %v778 = vpop.f32.mrf.mxu0
      %v779 = vpop.f32.mrf.mxu0
      %v780 = vadd.f32 %v692, %v779
      %v781 = vpop.f32.mrf.mxu0
      %782 = vmatprep.mubr.bf16.mxu0 0
      %783 = vmatmul.mubr.bf16.gmra.mxu0 %v662
      %v784 = vpop.f32.mrf.mxu0
      %v785 = vadd.f32 %v692, %v784
      %v786 = vpop.f32.mrf.mxu0
      %v787 = vpop.f32.mrf.mxu0
      %v788 = vadd.f32 %v692, %v787
      %v789 = vpop.f32.mrf.mxu0
      %790 = vmatprep.mubr.bf16.mxu0 0
      %791 = vmatmul.mubr.bf16.gmra.mxu0 %v663
      %v792 = vpop.f32.mrf.mxu0
      %v793 = vadd.f32 %v692, %v792
      %v794 = vpop.f32.mrf.mxu0
      %v795 = vpop.f32.mrf.mxu0
      %v796 = vadd.f32 %v692, %v795
      %v797 = vpop.f32.mrf.mxu0
      %798 = vmatprep.mubr.bf16.mxu0 0
      %799 = vmatmul.mubr.bf16.gmra.mxu0 %v664
      %v800 = vpop.f32.mrf.mxu0
      %v801 = vadd.f32 %v692, %v800
      %v802 = vpop.f32.mrf.mxu0
      %v803 = vpop.f32.mrf.mxu0
      %v804 = vadd.f32 %v692, %v803
      %v805 = vpop.f32.mrf.mxu0
      %806 = vmatprep.mubr.bf16.mxu0 0
      %807 = vmatmul.mubr.bf16.gmra.mxu0 %v665
      %v808 = vpop.f32.mrf.mxu0
      %v809 = vadd.f32 %v692, %v808
      %v810 = vpop.f32.mrf.mxu0
      %v811 = vpop.f32.mrf.mxu0
      %v812 = vadd.f32 %v692, %v811
      %v813 = vpop.f32.mrf.mxu0
      %814 = vmatprep.mubr.bf16.mxu0 0
      %815 = vmatmul.mubr.bf16.gmra.mxu0 %v666
      %v816 = vpop.f32.mrf.mxu0
      %v817 = vadd.f32 %v692, %v816
      %v818 = vpop.f32.mrf.mxu0
      %v819 = vpop.f32.mrf.mxu0
      %v820 = vadd.f32 %v692, %v819
      %v821 = vpop.f32.mrf.mxu0
      %822 = vmatprep.mubr.bf16.mxu0 0
      %823 = vmatmul.mubr.bf16.gmra.mxu0 %v667
      %v824 = vpop.f32.mrf.mxu0
      %v825 = vadd.f32 %v692, %v824
      %v826 = vpop.f32.mrf.mxu0
      %v827 = vpop.f32.mrf.mxu0
      %v828 = vadd.f32 %v692, %v827
      %v829 = vpop.f32.mrf.mxu0
      %830 = vmatprep.mubr.bf16.mxu0 0
      %831 = vmatmul.mubr.bf16.gmra.mxu0 %v668
      %v832 = vpop.f32.mrf.mxu0
      %v833 = vadd.f32 %v692, %v832
      %v834 = vpop.f32.mrf.mxu0
      %v835 = vpop.f32.mrf.mxu0
      %v836 = vadd.f32 %v692, %v835
      %v837 = vpop.f32.mrf.mxu0
      %838 = vdwg.mxu0
      %v839 = vmax.f32 %v777, 0.0
      %v840 = vmax.f32 %v780, 0.0
      %v841 = vmax.f32 %v785, 0.0
      %v842 = vmax.f32 %v788, 0.0
      %v843 = vmax.f32 %v793, 0.0
      %v844 = vmax.f32 %v796, 0.0
      %v845 = vmax.f32 %v801, 0.0
      %v846 = vmax.f32 %v804, 0.0
      %v847 = vmax.f32 %v809, 0.0
      %v848 = vmax.f32 %v812, 0.0
      %v849 = vmax.f32 %v817, 0.0
      %v850 = vmax.f32 %v820, 0.0
      %v851 = vmax.f32 %v825, 0.0
      %v852 = vmax.f32 %v828, 0.0
      %v853 = vmax.f32 %v833, 0.0
      %v854 = vmax.f32 %v836, 0.0
      %v855 = vpack.c.bf16 %v840, %v839
      %v856 = vpack.c.bf16 %v842, %v841
      %v857 = vpack.c.bf16 %v844, %v843
      %v858 = vpack.c.bf16 %v846, %v845
      %v859 = vpack.c.bf16 %v848, %v847
      %v860 = vpack.c.bf16 %v850, %v849
      %v861 = vpack.c.bf16 %v852, %v851
      %v862 = vpack.c.bf16 %v854, %v853
      %s863 = scalar_lea.vmem %s2, 128
      %v864 = vld [vmem:[%s863] sm:$0xf]
      %v865 = vld [vmem:[%s863 + $0x4] sm:$0xf]
      %v866 = vld [vmem:[%s863 + $0x8] sm:$0xf]
      %v867 = vld [vmem:[%s863 + $0xc] sm:$0xf]
      %v868 = vld [vmem:[%s863 + $0x10] sm:$0xf]
      %v869 = vld [vmem:[%s863 + $0x14] sm:$0xf]
      %v870 = vld [vmem:[%s863 + $0x18] sm:$0xf]
      %v871 = vld [vmem:[%s863 + $0x1c] sm:$0xf]
      %v872 = vld [vmem:[%s863 + $0x20] sm:$0xf]
      %v873 = vld [vmem:[%s863 + $0x24] sm:$0xf]
      %v874 = vld [vmem:[%s863 + $0x28] sm:$0xf]
      %v875 = vld [vmem:[%s863 + $0x2c] sm:$0xf]
      %v876 = vld [vmem:[%s863 + $0x30] sm:$0xf]
      %v877 = vld [vmem:[%s863 + $0x34] sm:$0xf]
      %v878 = vld [vmem:[%s863 + $0x38] sm:$0xf]
      %v879 = vld [vmem:[%s863 + $0x3c] sm:$0xf]
      %v880 = vld [vmem:[%s4] sm:$0xf]
      %v881 = vld [vmem:[%s4 + $0x4] sm:$0xf]
      %v882 = vld [vmem:[%s4 + $0x8] sm:$0xf]
      %v883 = vld [vmem:[%s4 + $0xc] sm:$0xf]
      %v888 = vunpack.c.l.b16 %v880
      %v889 = vunpack.c.l.b16 %v881
      %v890 = vunpack.c.l.b16 %v882
      %v891 = vunpack.c.l.b16 %v883
      %v892 = vpack.c.b16 %v889, %v888
      %v893 = vpack.c.b16 %v891, %v890
      %896 = vmatprep.subr.bf16.mxu0 0
      %897 = vmatpush1.bf16.msra.mxu0 0
      %898 = vmatprep.subr.bf16.mxu0 0
      %899 = vmatpush1.bf16.msra.mxu0 0
      %900 = vmatprep.subr.bf16.mxu0 0
      %901 = vmatpush1.bf16.msra.mxu0 0
      %902 = vmatprep.subr.bf16.mxu0 0
      %903 = vmatpush1.bf16.msra.mxu0 0
      %904 = vmatprep.subr.bf16.mxu0 0
      %905 = vmatpush1.bf16.msra.mxu0 0
      %906 = vmatprep.subr.bf16.mxu0 0
      %907 = vmatpush1.bf16.msra.mxu0 0
      %908 = vmatprep.subr.bf16.mxu0 0
      %909 = vmatpush1.bf16.msra.mxu0 %v893
      %910 = vmatprep.subr.bf16.mxu0 0
      %911 = vmatpush1.bf16.msra.mxu0 %v892
      %912 = vmatprep.subr.bf16.mxu0 0
      %913 = vmatpush2.bf16.msra.mxu0 0
      %914 = vmatprep.subr.bf16.mxu0 0
      %915 = vmatpush2.bf16.msra.mxu0 0
      %916 = vmatprep.subr.bf16.mxu0 0
      %917 = vmatpush2.bf16.msra.mxu0 0
      %918 = vmatprep.subr.bf16.mxu0 0
      %919 = vmatpush2.bf16.msra.mxu0 0
      %920 = vmatprep.subr.bf16.mxu0 0
      %921 = vmatpush2.bf16.msra.mxu0 0
      %922 = vmatprep.subr.bf16.mxu0 0
      %923 = vmatpush2.bf16.msra.mxu0 0
      %924 = vmatprep.subr.bf16.mxu0 0
      %925 = vmatpush2.bf16.msra.mxu0 0
      %926 = vmatprep.subr.bf16.mxu0 0
      %927 = vmatpush2.bf16.msra.mxu0 0
      %928 = vmatprep.mubr.bf16.mxu0 0
      %929 = vmatmul.mubr.bf16.gmra.mxu0 %v332
      %v930 = vpop.f32.mrf.mxu0
      %v931 = vadd.f32 0.0, %v930
      %v932 = vpop.f32.mrf.mxu0
      %v933 = vpop.f32.mrf.mxu0
      %v934 = vadd.f32 0.0, %v933
      %v935 = vpop.f32.mrf.mxu0
      %936 = vmatprep.mubr.bf16.mxu0 0
      %937 = vmatmul.mubr.bf16.gmra.mxu0 %v335
      %v938 = vpop.f32.mrf.mxu0
      %v939 = vadd.f32 0.0, %v938
      %v940 = vpop.f32.mrf.mxu0
      %v941 = vpop.f32.mrf.mxu0
      %v942 = vadd.f32 0.0, %v941
      %v943 = vpop.f32.mrf.mxu0
      %944 = vmatprep.mubr.bf16.mxu0 0
      %945 = vmatmul.mubr.bf16.gmra.mxu0 %v338
      %v946 = vpop.f32.mrf.mxu0
      %v947 = vadd.f32 0.0, %v946
      %v948 = vpop.f32.mrf.mxu0
      %v949 = vpop.f32.mrf.mxu0
      %v950 = vadd.f32 0.0, %v949
      %v951 = vpop.f32.mrf.mxu0
      %952 = vmatprep.mubr.bf16.mxu0 0
      %953 = vmatmul.mubr.bf16.gmra.mxu0 %v341
      %v954 = vpop.f32.mrf.mxu0
      %v955 = vadd.f32 0.0, %v954
      %v956 = vpop.f32.mrf.mxu0
      %v957 = vpop.f32.mrf.mxu0
      %v958 = vadd.f32 0.0, %v957
      %v959 = vpop.f32.mrf.mxu0
      %960 = vmatprep.mubr.bf16.mxu0 0
      %961 = vmatmul.mubr.bf16.gmra.mxu0 %v344
      %v962 = vpop.f32.mrf.mxu0
      %v963 = vadd.f32 0.0, %v962
      %v964 = vpop.f32.mrf.mxu0
      %v965 = vpop.f32.mrf.mxu0
      %v966 = vadd.f32 0.0, %v965
      %v967 = vpop.f32.mrf.mxu0
      %968 = vmatprep.mubr.bf16.mxu0 0
      %969 = vmatmul.mubr.bf16.gmra.mxu0 %v347
      %v970 = vpop.f32.mrf.mxu0
      %v971 = vadd.f32 0.0, %v970
      %v972 = vpop.f32.mrf.mxu0
      %v973 = vpop.f32.mrf.mxu0
      %v974 = vadd.f32 0.0, %v973
      %v975 = vpop.f32.mrf.mxu0
      %976 = vmatprep.mubr.bf16.mxu0 0
      %977 = vmatmul.mubr.bf16.gmra.mxu0 %v350
      %v978 = vpop.f32.mrf.mxu0
      %v979 = vadd.f32 0.0, %v978
      %v980 = vpop.f32.mrf.mxu0
      %v981 = vpop.f32.mrf.mxu0
      %v982 = vadd.f32 0.0, %v981
      %v983 = vpop.f32.mrf.mxu0
      %984 = vmatprep.mubr.bf16.mxu0 0
      %985 = vmatmul.mubr.bf16.gmra.mxu0 %v353
      %v986 = vpop.f32.mrf.mxu0
      %v987 = vadd.f32 0.0, %v986
      %v988 = vpop.f32.mrf.mxu0
      %v989 = vpop.f32.mrf.mxu0
      %v990 = vadd.f32 0.0, %v989
      %v991 = vpop.f32.mrf.mxu0
      %992 = vdwg.mxu0
      %v1009 = vunpack.c.l.b16 %v864
      %v1010 = vunpack.c.l.b16 %v865
      %v1011 = vunpack.c.l.b16 %v866
      %v1012 = vunpack.c.l.b16 %v867
      %v1013 = vunpack.c.l.b16 %v868
      %v1014 = vunpack.c.l.b16 %v869
      %v1015 = vunpack.c.l.b16 %v870
      %v1016 = vunpack.c.l.b16 %v871
      %v1017 = vunpack.c.l.b16 %v872
      %v1018 = vunpack.c.l.b16 %v873
      %v1019 = vunpack.c.l.b16 %v874
      %v1020 = vunpack.c.l.b16 %v875
      %v1021 = vunpack.c.l.b16 %v876
      %v1022 = vunpack.c.l.b16 %v877
      %v1023 = vunpack.c.l.b16 %v878
      %v1024 = vunpack.c.l.b16 %v879
      %v1025 = vpack.c.b16 %v1010, %v1009
      %v1026 = vpack.c.b16 %v1012, %v1011
      %v1027 = vpack.c.b16 %v1014, %v1013
      %v1028 = vpack.c.b16 %v1016, %v1015
      %v1029 = vpack.c.b16 %v1018, %v1017
      %v1030 = vpack.c.b16 %v1020, %v1019
      %v1031 = vpack.c.b16 %v1022, %v1021
      %v1032 = vpack.c.b16 %v1024, %v1023
      %1041 = vmatprep.subr.bf16.mxu0 0
      %1042 = vmatpush1.bf16.msra.mxu0 %v1032
      %1043 = vmatprep.subr.bf16.mxu0 0
      %1044 = vmatpush1.bf16.msra.mxu0 %v1031
      %1045 = vmatprep.subr.bf16.mxu0 0
      %1046 = vmatpush1.bf16.msra.mxu0 %v1030
      %1047 = vmatprep.subr.bf16.mxu0 0
      %1048 = vmatpush1.bf16.msra.mxu0 %v1029
      %1049 = vmatprep.subr.bf16.mxu0 0
      %1050 = vmatpush1.bf16.msra.mxu0 %v1028
      %1051 = vmatprep.subr.bf16.mxu0 0
      %1052 = vmatpush1.bf16.msra.mxu0 %v1027
      %1053 = vmatprep.subr.bf16.mxu0 0
      %1054 = vmatpush1.bf16.msra.mxu0 %v1026
      %1055 = vmatprep.subr.bf16.mxu0 0
      %1056 = vmatpush1.bf16.msra.mxu0 %v1025
      %1057 = vmatprep.subr.bf16.mxu0 0
      %1058 = vmatpush2.bf16.msra.mxu0 0
      %1059 = vmatprep.subr.bf16.mxu0 0
      %1060 = vmatpush2.bf16.msra.mxu0 0
      %1061 = vmatprep.subr.bf16.mxu0 0
      %1062 = vmatpush2.bf16.msra.mxu0 0
      %1063 = vmatprep.subr.bf16.mxu0 0
      %1064 = vmatpush2.bf16.msra.mxu0 0
      %1065 = vmatprep.subr.bf16.mxu0 0
      %1066 = vmatpush2.bf16.msra.mxu0 0
      %1067 = vmatprep.subr.bf16.mxu0 0
      %1068 = vmatpush2.bf16.msra.mxu0 0
      %1069 = vmatprep.subr.bf16.mxu0 0
      %1070 = vmatpush2.bf16.msra.mxu0 0
      %1071 = vmatprep.subr.bf16.mxu0 0
      %1072 = vmatpush2.bf16.msra.mxu0 0
      %1073 = vmatprep.mubr.bf16.mxu0 0
      %1074 = vmatmul.mubr.bf16.gmra.mxu0 %v855
      %v1075 = vpop.f32.mrf.mxu0
      %v1076 = vadd.f32 %v931, %v1075
      %v1077 = vpop.f32.mrf.mxu0
      %v1078 = vpop.f32.mrf.mxu0
      %v1079 = vadd.f32 %v934, %v1078
      %v1080 = vpop.f32.mrf.mxu0
      %1081 = vmatprep.mubr.bf16.mxu0 0
      %1082 = vmatmul.mubr.bf16.gmra.mxu0 %v856
      %v1083 = vpop.f32.mrf.mxu0
      %v1084 = vadd.f32 %v939, %v1083
      %v1085 = vpop.f32.mrf.mxu0
      %v1086 = vpop.f32.mrf.mxu0
      %v1087 = vadd.f32 %v942, %v1086
      %v1088 = vpop.f32.mrf.mxu0
      %1089 = vmatprep.mubr.bf16.mxu0 0
      %1090 = vmatmul.mubr.bf16.gmra.mxu0 %v857
      %v1091 = vpop.f32.mrf.mxu0
      %v1092 = vadd.f32 %v947, %v1091
      %v1093 = vpop.f32.mrf.mxu0
      %v1094 = vpop.f32.mrf.mxu0
      %v1095 = vadd.f32 %v950, %v1094
      %v1096 = vpop.f32.mrf.mxu0
      %1097 = vmatprep.mubr.bf16.mxu0 0
      %1098 = vmatmul.mubr.bf16.gmra.mxu0 %v858
      %v1099 = vpop.f32.mrf.mxu0
      %v1100 = vadd.f32 %v955, %v1099
      %v1101 = vpop.f32.mrf.mxu0
      %v1102 = vpop.f32.mrf.mxu0
      %v1103 = vadd.f32 %v958, %v1102
      %v1104 = vpop.f32.mrf.mxu0
      %1105 = vmatprep.mubr.bf16.mxu0 0
      %1106 = vmatmul.mubr.bf16.gmra.mxu0 %v859
      %v1107 = vpop.f32.mrf.mxu0
      %v1108 = vadd.f32 %v963, %v1107
      %v1109 = vpop.f32.mrf.mxu0
      %v1110 = vpop.f32.mrf.mxu0
      %v1111 = vadd.f32 %v966, %v1110
      %v1112 = vpop.f32.mrf.mxu0
      %1113 = vmatprep.mubr.bf16.mxu0 0
      %1114 = vmatmul.mubr.bf16.gmra.mxu0 %v860
      %v1115 = vpop.f32.mrf.mxu0
      %v1116 = vadd.f32 %v971, %v1115
      %v1117 = vpop.f32.mrf.mxu0
      %v1118 = vpop.f32.mrf.mxu0
      %v1119 = vadd.f32 %v974, %v1118
      %v1120 = vpop.f32.mrf.mxu0
      %1121 = vmatprep.mubr.bf16.mxu0 0
      %1122 = vmatmul.mubr.bf16.gmra.mxu0 %v861
      %v1123 = vpop.f32.mrf.mxu0
      %v1124 = vadd.f32 %v979, %v1123
      %v1125 = vpop.f32.mrf.mxu0
      %v1126 = vpop.f32.mrf.mxu0
      %v1127 = vadd.f32 %v982, %v1126
      %v1128 = vpop.f32.mrf.mxu0
      %1129 = vmatprep.mubr.bf16.mxu0 0
      %1130 = vmatmul.mubr.bf16.gmra.mxu0 %v862
      %v1131 = vpop.f32.mrf.mxu0
      %v1132 = vadd.f32 %v987, %v1131
      %v1133 = vpop.f32.mrf.mxu0
      %v1134 = vpop.f32.mrf.mxu0
      %v1135 = vadd.f32 %v990, %v1134
      %v1136 = vpop.f32.mrf.mxu0
      %1137 = vdwg.mxu0
      %s1138 = scalar_lea.vmem %s3, 3
      %v1139 = vld [vmem:[%s1138] sm:$0x1]
      %v1141 = vlaneseq
      %v1142 = vshrl.u32 %v1141, 7
      %v1143 = vsub.s32 0, %v1142
      %v1144 = vrot.slane %v1139, %v1143
      %v1146 = vadd.f32 %v1076, %v1144
      %v1147 = vadd.f32 %v1079, %v1144
      %v1148 = vadd.f32 %v1084, %v1144
      %v1149 = vadd.f32 %v1087, %v1144
      %v1150 = vadd.f32 %v1092, %v1144
      %v1151 = vadd.f32 %v1095, %v1144
      %v1152 = vadd.f32 %v1100, %v1144
      %v1153 = vadd.f32 %v1103, %v1144
      %v1154 = vadd.f32 %v1108, %v1144
      %v1155 = vadd.f32 %v1111, %v1144
      %v1156 = vadd.f32 %v1116, %v1144
      %v1157 = vadd.f32 %v1119, %v1144
      %v1158 = vadd.f32 %v1124, %v1144
      %v1159 = vadd.f32 %v1127, %v1144
      %v1160 = vadd.f32 %v1132, %v1144
      %v1161 = vadd.f32 %v1135, %v1144
      %v1162 = vmax.f32 %v1146, 0.0
      %v1163 = vmax.f32 %v1147, 0.0
      %v1164 = vmax.f32 %v1148, 0.0
      %v1165 = vmax.f32 %v1149, 0.0
      %v1166 = vmax.f32 %v1150, 0.0
      %v1167 = vmax.f32 %v1151, 0.0
      %v1168 = vmax.f32 %v1152, 0.0
      %v1169 = vmax.f32 %v1153, 0.0
      %v1170 = vmax.f32 %v1154, 0.0
      %v1171 = vmax.f32 %v1155, 0.0
      %v1172 = vmax.f32 %v1156, 0.0
      %v1173 = vmax.f32 %v1157, 0.0
      %v1174 = vmax.f32 %v1158, 0.0
      %v1175 = vmax.f32 %v1159, 0.0
      %v1176 = vmax.f32 %v1160, 0.0
      %v1177 = vmax.f32 %v1161, 0.0
      %v1178 = vpack.c.bf16 %v1163, %v1162
      %v1179 = vpack.c.bf16 %v1165, %v1164
      %v1180 = vpack.c.bf16 %v1167, %v1166
      %v1181 = vpack.c.bf16 %v1169, %v1168
      %v1182 = vpack.c.bf16 %v1171, %v1170
      %v1183 = vpack.c.bf16 %v1173, %v1172
      %v1184 = vpack.c.bf16 %v1175, %v1174
      %v1185 = vpack.c.bf16 %v1177, %v1176
      %v1186 = vld [vmem:[%s5] sm:$0xf]
      %v1187 = vld [vmem:[%s5 + $0x4] sm:$0xf]
      %v1188 = vld [vmem:[%s5 + $0x8] sm:$0xf]
      %v1189 = vld [vmem:[%s5 + $0xc] sm:$0xf]
      %v1190 = vld [vmem:[%s5 + $0x10] sm:$0xf]
      %v1191 = vld [vmem:[%s5 + $0x14] sm:$0xf]
      %v1192 = vld [vmem:[%s5 + $0x18] sm:$0xf]
      %v1193 = vld [vmem:[%s5 + $0x1c] sm:$0xf]
      %v1194 = vld [vmem:[%s5 + $0x20] sm:$0xf]
      %v1195 = vld [vmem:[%s5 + $0x24] sm:$0xf]
      %v1196 = vld [vmem:[%s5 + $0x28] sm:$0xf]
      %v1197 = vld [vmem:[%s5 + $0x2c] sm:$0xf]
      %v1198 = vld [vmem:[%s5 + $0x30] sm:$0xf]
      %v1199 = vld [vmem:[%s5 + $0x34] sm:$0xf]
      %v1200 = vld [vmem:[%s5 + $0x38] sm:$0xf]
      %v1201 = vld [vmem:[%s5 + $0x3c] sm:$0xf]
      %v1202 = vld [vmem:[%s6] sm:$0x1]
      %v1204 = vlaneseq
      %v1205 = vshrl.u32 %v1204, 7
      %v1206 = vsub.s32 0, %v1205
      %v1207 = vrot.slane %v1202, %v1206
      %v1225 = vunpack.c.l.b16 %v1186
      %v1226 = vunpack.c.l.b16 %v1187
      %v1227 = vunpack.c.l.b16 %v1188
      %v1228 = vunpack.c.l.b16 %v1189
      %v1229 = vunpack.c.l.b16 %v1190
      %v1230 = vunpack.c.l.b16 %v1191
      %v1231 = vunpack.c.l.b16 %v1192
      %v1232 = vunpack.c.l.b16 %v1193
      %v1233 = vunpack.c.l.b16 %v1194
      %v1234 = vunpack.c.l.b16 %v1195
      %v1235 = vunpack.c.l.b16 %v1196
      %v1236 = vunpack.c.l.b16 %v1197
      %v1237 = vunpack.c.l.b16 %v1198
      %v1238 = vunpack.c.l.b16 %v1199
      %v1239 = vunpack.c.l.b16 %v1200
      %v1240 = vunpack.c.l.b16 %v1201
      %v1241 = vpack.c.b16 %v1226, %v1225
      %v1242 = vpack.c.b16 %v1228, %v1227
      %v1243 = vpack.c.b16 %v1230, %v1229
      %v1244 = vpack.c.b16 %v1232, %v1231
      %v1245 = vpack.c.b16 %v1234, %v1233
      %v1246 = vpack.c.b16 %v1236, %v1235
      %v1247 = vpack.c.b16 %v1238, %v1237
      %v1248 = vpack.c.b16 %v1240, %v1239
      %1257 = vmatprep.subr.bf16.mxu0 0
      %1258 = vmatpush1.bf16.msra.mxu0 %v1248
      %1259 = vmatprep.subr.bf16.mxu0 0
      %1260 = vmatpush1.bf16.msra.mxu0 %v1247
      %1261 = vmatprep.subr.bf16.mxu0 0
      %1262 = vmatpush1.bf16.msra.mxu0 %v1246
      %1263 = vmatprep.subr.bf16.mxu0 0
      %1264 = vmatpush1.bf16.msra.mxu0 %v1245
      %1265 = vmatprep.subr.bf16.mxu0 0
      %1266 = vmatpush1.bf16.msra.mxu0 %v1244
      %1267 = vmatprep.subr.bf16.mxu0 0
      %1268 = vmatpush1.bf16.msra.mxu0 %v1243
      %1269 = vmatprep.subr.bf16.mxu0 0
      %1270 = vmatpush1.bf16.msra.mxu0 %v1242
      %1271 = vmatprep.subr.bf16.mxu0 0
      %1272 = vmatpush1.bf16.msra.mxu0 %v1241
      %1273 = vmatprep.subr.bf16.mxu0 0
      %1274 = vmatpush2.bf16.msra.mxu0 0
      %1275 = vmatprep.subr.bf16.mxu0 0
      %1276 = vmatpush2.bf16.msra.mxu0 0
      %1277 = vmatprep.subr.bf16.mxu0 0
      %1278 = vmatpush2.bf16.msra.mxu0 0
      %1279 = vmatprep.subr.bf16.mxu0 0
      %1280 = vmatpush2.bf16.msra.mxu0 0
      %1281 = vmatprep.subr.bf16.mxu0 0
      %1282 = vmatpush2.bf16.msra.mxu0 0
      %1283 = vmatprep.subr.bf16.mxu0 0
      %1284 = vmatpush2.bf16.msra.mxu0 0
      %1285 = vmatprep.subr.bf16.mxu0 0
      %1286 = vmatpush2.bf16.msra.mxu0 0
      %1287 = vmatprep.subr.bf16.mxu0 0
      %1288 = vmatpush2.bf16.msra.mxu0 0
      %1289 = vmatprep.mubr.bf16.mxu0 0
      %1290 = vmatmul.mubr.bf16.gmra.mxu0 %v1178
      %v1291 = vpop.f32.mrf.mxu0
      %v1292 = vadd.f32 %v1207, %v1291
      %v1293 = vpop.f32.mrf.mxu0
      %v1294 = vpop.f32.mrf.mxu0
      %v1295 = vadd.f32 %v1207, %v1294
      %v1296 = vpop.f32.mrf.mxu0
      %1297 = vmatprep.mubr.bf16.mxu0 0
      %1298 = vmatmul.mubr.bf16.gmra.mxu0 %v1179
      %v1299 = vpop.f32.mrf.mxu0
      %v1300 = vadd.f32 %v1207, %v1299
      %v1301 = vpop.f32.mrf.mxu0
      %v1302 = vpop.f32.mrf.mxu0
      %v1303 = vadd.f32 %v1207, %v1302
      %v1304 = vpop.f32.mrf.mxu0
      %1305 = vmatprep.mubr.bf16.mxu0 0
      %1306 = vmatmul.mubr.bf16.gmra.mxu0 %v1180
      %v1307 = vpop.f32.mrf.mxu0
      %v1308 = vadd.f32 %v1207, %v1307
      %v1309 = vpop.f32.mrf.mxu0
      %v1310 = vpop.f32.mrf.mxu0
      %v1311 = vadd.f32 %v1207, %v1310
      %v1312 = vpop.f32.mrf.mxu0
      %1313 = vmatprep.mubr.bf16.mxu0 0
      %1314 = vmatmul.mubr.bf16.gmra.mxu0 %v1181
      %v1315 = vpop.f32.mrf.mxu0
      %v1316 = vadd.f32 %v1207, %v1315
      %v1317 = vpop.f32.mrf.mxu0
      %v1318 = vpop.f32.mrf.mxu0
      %v1319 = vadd.f32 %v1207, %v1318
      %v1320 = vpop.f32.mrf.mxu0
      %1321 = vmatprep.mubr.bf16.mxu0 0
      %1322 = vmatmul.mubr.bf16.gmra.mxu0 %v1182
      %v1323 = vpop.f32.mrf.mxu0
      %v1324 = vadd.f32 %v1207, %v1323
      %v1325 = vpop.f32.mrf.mxu0
      %v1326 = vpop.f32.mrf.mxu0
      %v1327 = vadd.f32 %v1207, %v1326
      %v1328 = vpop.f32.mrf.mxu0
      %1329 = vmatprep.mubr.bf16.mxu0 0
      %1330 = vmatmul.mubr.bf16.gmra.mxu0 %v1183
      %v1331 = vpop.f32.mrf.mxu0
      %v1332 = vadd.f32 %v1207, %v1331
      %v1333 = vpop.f32.mrf.mxu0
      %v1334 = vpop.f32.mrf.mxu0
      %v1335 = vadd.f32 %v1207, %v1334
      %v1336 = vpop.f32.mrf.mxu0
      %1337 = vmatprep.mubr.bf16.mxu0 0
      %1338 = vmatmul.mubr.bf16.gmra.mxu0 %v1184
      %v1339 = vpop.f32.mrf.mxu0
      %v1340 = vadd.f32 %v1207, %v1339
      %v1341 = vpop.f32.mrf.mxu0
      %v1342 = vpop.f32.mrf.mxu0
      %v1343 = vadd.f32 %v1207, %v1342
      %v1344 = vpop.f32.mrf.mxu0
      %1345 = vmatprep.mubr.bf16.mxu0 0
      %1346 = vmatmul.mubr.bf16.gmra.mxu0 %v1185
      %v1347 = vpop.f32.mrf.mxu0
      %v1348 = vadd.f32 %v1207, %v1347
      %v1349 = vpop.f32.mrf.mxu0
      %v1350 = vpop.f32.mrf.mxu0
      %v1351 = vadd.f32 %v1207, %v1350
      %v1352 = vpop.f32.mrf.mxu0
      %1353 = vdwg.mxu0
      %vm1354 = vcmask 130048
      %1355 = vst.msk [vmem:[%s280] sm:$0xff] %vm1354, %v1292
      %1356 = vst.msk [vmem:[%s280 + $0x8] sm:$0xff] %vm1354, %v1295
      %1357 = vst.msk [vmem:[%s280 + $0x10] sm:$0xff] %vm1354, %v1300
      %1358 = vst.msk [vmem:[%s280 + $0x18] sm:$0xff] %vm1354, %v1303
      %1359 = vst.msk [vmem:[%s280 + $0x20] sm:$0xff] %vm1354, %v1308
      %1360 = vst.msk [vmem:[%s280 + $0x28] sm:$0xff] %vm1354, %v1311
      %1361 = vst.msk [vmem:[%s280 + $0x30] sm:$0xff] %vm1354, %v1316
      %1362 = vst.msk [vmem:[%s280 + $0x38] sm:$0xff] %vm1354, %v1319
      %1363 = vst.msk [vmem:[%s280 + $0x40] sm:$0xff] %vm1354, %v1324
      %1364 = vst.msk [vmem:[%s280 + $0x48] sm:$0xff] %vm1354, %v1327
      %1365 = vst.msk [vmem:[%s280 + $0x50] sm:$0xff] %vm1354, %v1332
      %1366 = vst.msk [vmem:[%s280 + $0x58] sm:$0xff] %vm1354, %v1335
      %1367 = vst.msk [vmem:[%s280 + $0x60] sm:$0xff] %vm1354, %v1340
      %1368 = vst.msk [vmem:[%s280 + $0x68] sm:$0xff] %vm1354, %v1343
      %1369 = vst.msk [vmem:[%s280 + $0x70] sm:$0xff] %vm1354, %v1348
      %1370 = vst.msk [vmem:[%s280 + $0x78] sm:$0xff] %vm1354, %v1351
      %s1371 = smul.u32 16, %s18
      %p1372 = scmp.lt.s32.totalorder %s1371, 31
      %s1373 = scalar_select %p1372, %s1371, 31
      %s1374 = smul.addr %s1373, 8
      %s1375 = scalar_lea.vmem %s7, %s1374
      // Predicated region
      $region49: #{tpu_custom_call.1} parent=47 // pred_check
        %p1376 = pneg %p188
      $region50: #{tpu_custom_call.1} parent=47 // pred_check_branch
        %1378 = sbr.rel (%p1376) target = $region52
      $region51: #{tpu_custom_call.1} parent=47 // pred_region
        %s1379 = smul.u32 16, %s18
      $region52: #{tpu_custom_call.1} parent=47 // pred_fallthru
        _
    $region48: #{tpu_custom_call.1} parent=5 // pred_fallthru
      _
    %p1380 = scmp.le.s32.totalorder 2, %s13
    // Predicated region
    $region53: #{tpu_custom_call.1} parent=5 // pred_check
      %p1381 = pneg %p1380
    $region54: #{tpu_custom_call.1} parent=5 // pred_check_branch
      %1383 = sbr.rel (%p1381) target = $region56
    $region55: #{tpu_custom_call.1} parent=5 // pred_region
      %s1384 = ssub.s32 %s13, 2
      // Predicated region
      $region57: #{tpu_custom_call.1} parent=55 // pred_check
        %p1385 = pneg %p194
      $region58: #{tpu_custom_call.1} parent=55 // pred_check_branch
        %1387 = sbr.rel (%p1385) target = $region60
      $region59: #{tpu_custom_call.1} parent=55 // pred_region
        %s1388 = smul.u32 16, %s19
        %p1389 = scmp.lt.s32.totalorder %s1388, 31
        %s1390 = scalar_select %p1389, %s1388, 31
        %s1391 = smul.addr %s1390, 8
        %s1392 = scalar_lea.vmem %s7, %s1391
      $region60: #{tpu_custom_call.1} parent=55 // pred_fallthru
        _
    $region56: #{tpu_custom_call.1} parent=5 // pred_fallthru
      _
  $region6: #{tpu_custom_call.1} parent=0 // loop_footer
    %s17 = sadd.s32 1, %s13
  $region7: #{tpu_custom_call.1} parent=0 // loop_footer_branch
    %12 = sbr.rel target = $region3
  $region8: #{tpu_custom_call.1} parent=0 // loop_exit
    _

</llo_original>
